<compile_context>
chip_gen: v5e
topology: v5e:2x2
jax: 0.10.0
libtpu: 0.0.40
codegen_flags: <defaults>
</compile_context>

<pallas_src>
import functools

import jax
import jax.numpy as jnp
from jax import lax
from jax.experimental import pallas as pl
from jax.experimental.pallas import tpu as pltpu


# ----------------------------------------------------------------------------
# Kernel 1: hoisted input projection for a whole layer (all timesteps at once).
#   refs = (x_0, ..., x_{P-1}, w_0, ..., w_{P-1}, b, out)
#   x_p : (M, K_p)   f32    (M = seq*batch; P input "parts" = prev layer's directions)
#   w_p : (K_p, G)   f32    (G = 4 * D * H, gate-major packed columns)
#   b   : (1, G)     f32    (b_ih + b_hh, both directions, packed)
#   out : (M, G)     f32
# ----------------------------------------------------------------------------
def _input_proj_kernel(*refs):
    nparts = (len(refs) - 2) // 2
    x_refs = refs[:nparts]
    w_refs = refs[nparts:2 * nparts]
    b_ref = refs[2 * nparts]
    o_ref = refs[2 * nparts + 1]

    acc = b_ref[...] + jnp.dot(x_refs[0][...], w_refs[0][...],
                               preferred_element_type=jnp.float32)
    for p in range(1, nparts):
        acc = acc + jnp.dot(x_refs[p][...], w_refs[p][...],
                            preferred_element_type=jnp.float32)
    o_ref[...] = acc


# ----------------------------------------------------------------------------
# Kernel 2: fused (both-direction) LSTM recurrence over the full sequence.
#   gx_ref  : (seq, batch, G)   precomputed x@W_ih + b, forward time order, gate-major
#   whh_ref : (D*H, G)          block-packed recurrent weights (one matmul / step, N=G)
#   outputs : out_dir0 (seq,batch,H) [, out_dir1 (seq,batch,H)], hN (batch,D*H), cN (batch,D*H)
#   scratch : h_sc, c_sc (batch, D*H)  -- [fwd | bwd] state
# Gate-major column layout: [i(D*H) | f(D*H) | g(D*H) | o(D*H)], each D*H = [dir0 H, dir1 H].
# ----------------------------------------------------------------------------
def _lstm_recurrence_kernel(gx_ref, whh_ref, *rest, hid, ndirs, unroll):
    out_refs = rest[:ndirs]
    hN_ref, cN_ref = rest[ndirs], rest[ndirs + 1]
    h_sc, c_sc = rest[ndirs + 2], rest[ndirs + 3]

    seq, batch, G = gx_ref.shape
    DH = ndirs * hid

    h_sc[...] = jnp.zeros_like(h_sc)
    c_sc[...] = jnp.zeros_like(c_sc)

    # Loop-invariant values hoisted out of the recurrence (no per-step re-broadcast).
    whh = whh_ref[...]                                         # (DH, G) kept in vregs
    if ndirs == 2:
        col = lax.broadcasted_iota(jnp.int32, (batch, G), 1)
        bwd_cols = (col % DH) >= hid                           # backward-dir columns

    def one_step(s):
        # Single recurrent MXU matmul for both directions: (batch, DH) @ (DH, G).
        rec = jnp.dot(h_sc[...], whh, preferred_element_type=jnp.float32)
        if ndirs == 2:
            # Forward dir reads input gates at time s, backward dir at time seq-1-s.
            gx_t = jnp.where(bwd_cols, gx_ref[seq - 1 - s], gx_ref[s])
        else:
            gx_t = gx_ref[s]
        gates = gx_t + rec                                     # (batch, G)

        i_g = jax.nn.sigmoid(gates[:, 0:DH])
        f_g = jax.nn.sigmoid(gates[:, DH:2 * DH])
        g_g = jnp.tanh(gates[:, 2 * DH:3 * DH])
        o_g = jax.nn.sigmoid(gates[:, 3 * DH:4 * DH])

        c_new = f_g * c_sc[...] + i_g * g_g
        h_new = o_g * jnp.tanh(c_new)
        c_sc[...] = c_new
        h_sc[...] = h_new

        # Time-aligned per-direction outputs (full-row stores, no wrapper reverses).
        out_refs[0][s] = h_new[:, 0:hid]
        if ndirs == 2:
            out_refs[1][seq - 1 - s] = h_new[:, hid:DH]

    def chunk(ci, carry):
        base = ci * unroll
        for u in range(unroll):                                # manual unroll
            one_step(base + u)
        return carry

    lax.fori_loop(0, seq // unroll, chunk, 0)

    hN_ref[...] = h_sc[...]
    cN_ref[...] = c_sc[...]


# ----------------------------------------------------------------------------
# One LSTM layer (both directions) = 1 projection kernel + 1 recurrence kernel.
#   x_parts: tuple of (seq, batch, K_p) arrays (prev layer's per-direction outputs,
#            or the embedded input as a single part for layer 0).
# Returns (out_parts, h_n, c_n); h_n/c_n are (batch, D*H) = [fwd | bwd].
# ----------------------------------------------------------------------------
def lstm_layer(x_parts, wih_parts, whh_packed, b_packed, *, hid, ndirs):
    seq, batch = x_parts[0].shape[:2]
    DH = ndirs * hid
    G = 4 * DH
    M = seq * batch
    nparts = len(x_parts)
    assert nparts == len(wih_parts)

    vmem = lambda: pl.BlockSpec(memory_space=pltpu.MemorySpace.VMEM)

    # --- (1) hoisted input projection: one big MXU matmul over all timesteps ---
    xs2 = [jnp.asarray(xp, jnp.float32).reshape(M, xp.shape[2]) for xp in x_parts]
    gx2 = pl.pallas_call(
        _input_proj_kernel,
        out_shape=jax.ShapeDtypeStruct((M, G), jnp.float32),
        in_specs=[vmem() for _ in range(2 * nparts + 1)],
        out_specs=vmem(),
    )(*xs2, *wih_parts, b_packed)
    gx = gx2.reshape(seq, batch, G)

    # --- (2) fused bidirectional recurrence ---
    unroll = max(u for u in (4, 2, 1) if seq % u == 0)
    kernel = functools.partial(_lstm_recurrence_kernel,
                               hid=hid, ndirs=ndirs, unroll=unroll)
    out_shapes = tuple(
        [jax.ShapeDtypeStruct((seq, batch, hid), jnp.float32)] * ndirs
        + [jax.ShapeDtypeStruct((batch, DH), jnp.float32)] * 2)
    res = pl.pallas_call(
        kernel,
        out_shape=out_shapes,
        in_specs=[vmem(), vmem()],
        out_specs=tuple(vmem() for _ in range(ndirs + 2)),
        scratch_shapes=[
            pltpu.VMEM((batch, DH), jnp.float32),
            pltpu.VMEM((batch, DH), jnp.float32),
        ],
    )(gx, whh_packed)

    out_parts = tuple(res[:ndirs])
    h_n, c_n = res[ndirs], res[ndirs + 1]
    return out_parts, h_n, c_n


# ----------------------------------------------------------------------------
# Parameters: PyTorch-layout init + one-time packing into the kernel layout.
# ----------------------------------------------------------------------------
def init_encoder_params(key, input_dim, emb_dim, hid_dim, n_layers, bidirectional):
    params = {}
    key, k_emb = jax.random.split(key)
    params["embedding"] = jax.random.normal(k_emb, (input_dim, emb_dim), jnp.float32)

    num_dirs = 2 if bidirectional else 1
    k = 1.0 / float(jnp.sqrt(hid_dim))
    lstm = []
    for layer in range(n_layers):
        in_dim = emb_dim if layer == 0 else hid_dim * num_dirs
        dirs = []
        for _d in range(num_dirs):
            key, k1, k2, k3, k4 = jax.random.split(key, 5)
            dirs.append({
                "w_ih": jax.random.uniform(k1, (4 * hid_dim, in_dim), jnp.float32, -k, k),
                "w_hh": jax.random.uniform(k2, (4 * hid_dim, hid_dim), jnp.float32, -k, k),
                "b_ih": jax.random.uniform(k3, (4 * hid_dim,), jnp.float32, -k, k),
                "b_hh": jax.random.uniform(k4, (4 * hid_dim,), jnp.float32, -k, k),
            })
        lstm.append(dirs)
    params["lstm"] = lstm
    return params


def pack_encoder_params(raw, *, hid_dim, bidirectional):
    """One-time packing (transpose, bias combine, direction/gate packing).

    Packed column layout (G = 4*D*H): [i | f | g | o] blocks, each D*H wide and holding
    [dir0 H, dir1 H].  W_hh is block-structured so [h_fwd|h_bwd] @ W_hh gives both
    directions' recurrent gate contributions in one matmul."""
    ndirs = 2 if bidirectional else 1
    DH = ndirs * hid_dim
    G = 4 * DH
    packed = {"embedding": jnp.asarray(raw["embedding"], jnp.float32), "lstm": []}
    for layer, dirs in enumerate(raw["lstm"]):
        in_dim = dirs[0]["w_ih"].shape[1]
        wih = jnp.zeros((in_dim, G), jnp.float32)
        whh = jnp.zeros((DH, G), jnp.float32)
        b = jnp.zeros((1, G), jnp.float32)
        for d, p in enumerate(dirs):
            wih_t = jnp.asarray(p["w_ih"], jnp.float32).T          # (in_dim, 4H), gates i,f,g,o
            whh_t = jnp.asarray(p["w_hh"], jnp.float32).T          # (H, 4H)
            bias = jnp.asarray(p["b_ih"], jnp.float32) + jnp.asarray(p["b_hh"], jnp.float32)
            for g in range(4):
                dst = slice(g * DH + d * hid_dim, g * DH + (d + 1) * hid_dim)
                src = slice(g * hid_dim, (g + 1) * hid_dim)
                wih = wih.at[:, dst].set(wih_t[:, src])
                whh = whh.at[d * hid_dim:(d + 1) * hid_dim, dst].set(whh_t[:, src])
                b = b.at[0, dst].set(bias[src])
        if layer == 0:
            wih_parts = (wih,)                                     # single input part (embeddings)
        else:
            # split rows by the previous layer's per-direction output parts
            wih_parts = tuple(wih[p * hid_dim:(p + 1) * hid_dim, :] for p in range(ndirs))
        packed["lstm"].append((wih_parts, whh, b))
    return packed


# ----------------------------------------------------------------------------
# Encoder forward (glue in plain JAX, hot path in the Pallas kernels).
# ----------------------------------------------------------------------------
def encoder_forward(packed, src, *, n_layers, hid_dim, bidirectional):
    """src: (seq, batch) int32.  Returns (hidden, cell) with shape
    (n_layers, batch, D*hid_dim), matching the PyTorch module's reshape/transpose."""
    # Embedding lookup (XLA gather). Dropout = identity (eval mode).
    emb = jnp.take(packed["embedding"], src, axis=0)               # (seq, batch, emb)
    ndirs = 2 if bidirectional else 1

    x_parts = (emb,)
    hiddens, cells = [], []
    for layer in range(n_layers):
        wih_parts, whh, b = packed["lstm"][layer]
        x_parts, h_n, c_n = lstm_layer(x_parts, wih_parts, whh, b,
                                       hid=hid_dim, ndirs=ndirs)
        hiddens.append(h_n)
        cells.append(c_n)

    hidden = jnp.stack(hiddens, axis=0)
    cell = jnp.stack(cells, axis=0)
    return hidden, cell


# ----------------------------------------------------------------------------
# Pure-JAX reference (PyTorch-layout weights) for a correctness check.
# ----------------------------------------------------------------------------
def reference_encoder(raw, src, *, n_layers, hid_dim, bidirectional):
    x = jnp.take(raw["embedding"], src, axis=0)
    ndirs = 2 if bidirectional else 1
    hs, cs = [], []
    for layer in range(n_layers):
        outs, hl, cl = [], [], []
        for d in range(ndirs):
            p = raw["lstm"][layer][d]
            xs = x if d == 0 else x[::-1]

            def step(carry, x_t, p=p):
                h, c = carry
                gates = (jnp.dot(x_t, p["w_ih"].T, precision=lax.Precision.HIGHEST)
                         + jnp.dot(h, p["w_hh"].T, precision=lax.Precision.HIGHEST)
                         + p["b_ih"] + p["b_hh"])
                i, f, g, o = jnp.split(gates, 4, axis=-1)
                i = jax.nn.sigmoid(i); f = jax.nn.sigmoid(f)
                g = jnp.tanh(g); o = jax.nn.sigmoid(o)
                c = f * c + i * g
                h = o * jnp.tanh(c)
                return (h, c), h

            init = (jnp.zeros((x.shape[1], hid_dim), jnp.float32),
                    jnp.zeros((x.shape[1], hid_dim), jnp.float32))
            (h_n, c_n), out = lax.scan(step, init, xs)
            if d == 1:
                out = out[::-1]
            outs.append(out); hl.append(h_n); cl.append(c_n)
        x = jnp.concatenate(outs, axis=-1)
        hs.append(jnp.concatenate(hl, axis=-1))
        cs.append(jnp.concatenate(cl, axis=-1))
    return jnp.stack(hs, 0), jnp.stack(cs, 0)


if __name__ == "__main__":
    INPUT_DIM = 50       # vocab size
    EMB_DIM = 32
    HID_DIM = 32
    N_LAYERS = 2
    BIDIRECTIONAL = True
    SEQ_LEN = 8
    BATCH = 2

    key = jax.random.PRNGKey(0)
    key, k_params, k_src = jax.random.split(key, 3)

    raw_params = init_encoder_params(k_params, INPUT_DIM, EMB_DIM, HID_DIM,
                                     N_LAYERS, BIDIRECTIONAL)
    packed_params = pack_encoder_params(raw_params, hid_dim=HID_DIM,
                                        bidirectional=BIDIRECTIONAL)   # packed ONCE
    src = jax.random.randint(k_src, (SEQ_LEN, BATCH), 0, INPUT_DIM, dtype=jnp.int32)

    fwd = jax.jit(functools.partial(encoder_forward, n_layers=N_LAYERS,
                                    hid_dim=HID_DIM, bidirectional=BIDIRECTIONAL))
    hidden, cell = fwd(packed_params, src)
    jax.block_until_ready((hidden, cell))

    expected_shape = (N_LAYERS, BATCH, (2 if BIDIRECTIONAL else 1) * HID_DIM)
    assert hidden.shape == expected_shape, hidden.shape
    assert cell.shape == expected_shape, cell.shape
    assert jnp.all(jnp.isfinite(hidden)) and jnp.all(jnp.isfinite(cell))

    # Numerical check against a pure-JAX reference LSTM (PyTorch-layout weights).
    hidden_ref, cell_ref = reference_encoder(raw_params, src, n_layers=N_LAYERS,
                                             hid_dim=HID_DIM, bidirectional=BIDIRECTIONAL)
    assert bool(jnp.allclose(hidden, hidden_ref, atol=5e-3, rtol=5e-3)), \
        float(jnp.max(jnp.abs(hidden - hidden_ref)))
    assert bool(jnp.allclose(cell, cell_ref, atol=5e-3, rtol=5e-3)), \
        float(jnp.max(jnp.abs(cell - cell_ref)))

    print("KERNEL_OK")
</pallas_src>

<mosaic_0001>
module attributes {stable_mosaic.version = 11 : i64} {
  func.func @_input_proj_kernel(%arg0: memref<16x32xf32, #tpu.memory_space<vmem>>, %arg1: memref<32x256xf32, #tpu.memory_space<vmem>>, %arg2: memref<1x256xf32, #tpu.memory_space<vmem>>, %arg3: memref<16x256xf32, #tpu.memory_space<vmem>>) attributes {dimension_semantics = [], scalar_prefetch = 0 : i64, scratch_operands = 0 : i64, tpu.core_type = #tpu.core_type<tc>} {
    %c0 = arith.constant 0 : index
    %c0_0 = arith.constant 0 : index
    %0 = vector.load %arg2[%c0, %c0_0] : memref<1x256xf32, #tpu.memory_space<vmem>>, vector<1x256xf32>
    %c0_1 = arith.constant 0 : index
    %c0_2 = arith.constant 0 : index
    %1 = vector.load %arg0[%c0_1, %c0_2] : memref<16x32xf32, #tpu.memory_space<vmem>>, vector<16x32xf32>
    %c0_3 = arith.constant 0 : index
    %c0_4 = arith.constant 0 : index
    %2 = vector.load %arg1[%c0_3, %c0_4] : memref<32x256xf32, #tpu.memory_space<vmem>>, vector<32x256xf32>
    %cst = arith.constant dense<0.000000e+00> : vector<16x256xf32>
    %3 = tpu.matmul %1, %2, %cst {dimension_numbers = #tpu.dot_dimension_numbers<[1], [0], [0], [1], [0, 0, 1, 1], [], []>} : vector<16x32xf32>, vector<32x256xf32>, vector<16x256xf32> -> vector<16x256xf32>
    %4 = vector.broadcast %0 : vector<1x256xf32> to vector<16x256xf32>
    %5 = arith.addf %4, %3 : vector<16x256xf32>
    %c0_5 = arith.constant 0 : index
    %c0_6 = arith.constant 0 : index
    %6 = vector.load %arg3[%c0_5, %c0_6] : memref<16x256xf32, #tpu.memory_space<vmem>>, vector<16x256xf32>
    tpu.vector_store %arg3[%c0_5, %c0_6], %5 {strides = array<i32>} : memref<16x256xf32, #tpu.memory_space<vmem>>, vector<16x256xf32>,
    return
  }
}

module attributes {stable_mosaic.version = 11 : i64} {
  func.func @_input_proj_kernel(%arg0: memref<16x32xf32, #tpu.memory_space<vmem>>, %arg1: memref<16x32xf32, #tpu.memory_space<vmem>>, %arg2: memref<32x256xf32, #tpu.memory_space<vmem>>, %arg3: memref<32x256xf32, #tpu.memory_space<vmem>>, %arg4: memref<1x256xf32, #tpu.memory_space<vmem>>, %arg5: memref<16x256xf32, #tpu.memory_space<vmem>>) attributes {dimension_semantics = [], scalar_prefetch = 0 : i64, scratch_operands = 0 : i64, tpu.core_type = #tpu.core_type<tc>} {
    %c0 = arith.constant 0 : index
    %c0_0 = arith.constant 0 : index
    %0 = vector.load %arg4[%c0, %c0_0] : memref<1x256xf32, #tpu.memory_space<vmem>>, vector<1x256xf32>
    %c0_1 = arith.constant 0 : index
    %c0_2 = arith.constant 0 : index
    %1 = vector.load %arg0[%c0_1, %c0_2] : memref<16x32xf32, #tpu.memory_space<vmem>>, vector<16x32xf32>
    %c0_3 = arith.constant 0 : index
    %c0_4 = arith.constant 0 : index
    %2 = vector.load %arg2[%c0_3, %c0_4] : memref<32x256xf32, #tpu.memory_space<vmem>>, vector<32x256xf32>
    %cst = arith.constant dense<0.000000e+00> : vector<16x256xf32>
    %3 = tpu.matmul %1, %2, %cst {dimension_numbers = #tpu.dot_dimension_numbers<[1], [0], [0], [1], [0, 0, 1, 1], [], []>} : vector<16x32xf32>, vector<32x256xf32>, vector<16x256xf32> -> vector<16x256xf32>
    %4 = vector.broadcast %0 : vector<1x256xf32> to vector<16x256xf32>
    %5 = arith.addf %4, %3 : vector<16x256xf32>
    %c0_5 = arith.constant 0 : index
    %c0_6 = arith.constant 0 : index
    %6 = vector.load %arg1[%c0_5, %c0_6] : memref<16x32xf32, #tpu.memory_space<vmem>>, vector<16x32xf32>
    %c0_7 = arith.constant 0 : index
    %c0_8 = arith.constant 0 : index
    %7 = vector.load %arg3[%c0_7, %c0_8] : memref<32x256xf32, #tpu.memory_space<vmem>>, vector<32x256xf32>
    %cst_9 = arith.constant dense<0.000000e+00> : vector<16x256xf32>
    %8 = tpu.matmul %6, %7, %cst_9 {dimension_numbers = #tpu.dot_dimension_numbers<[1], [0], [0], [1], [0, 0, 1, 1], [], []>} : vector<16x32xf32>, vector<32x256xf32>, vector<16x256xf32> -> vector<16x256xf32>
    %9 = arith.addf %5, %8 : vector<16x256xf32>
    %c0_10 = arith.constant 0 : index
    %c0_11 = arith.constant 0 : index
    %10 = vector.load %arg5[%c0_10, %c0_11] : memref<16x256xf32, #tpu.memory_space<vmem>>, vector<16x256xf32>
    tpu.vector_store %arg5[%c0_10, %c0_11], %9 {strides = array<i32>} : memref<16x256xf32, #tpu.memory_space<vmem>>, vector<16x256xf32>,
    return
  }
}

module attributes {stable_mosaic.version = 11 : i64} {
  func.func @_lstm_recurrence_kernel(%arg0: memref<8x2x256xf32, #tpu.memory_space<vmem>>, %arg1: memref<64x256xf32, #tpu.memory_space<vmem>>, %arg2: memref<8x2x32xf32, #tpu.memory_space<vmem>>, %arg3: memref<8x2x32xf32, #tpu.memory_space<vmem>>, %arg4: memref<2x64xf32, #tpu.memory_space<vmem>>, %arg5: memref<2x64xf32, #tpu.memory_space<vmem>>, %arg6: memref<2x64xf32, #tpu.memory_space<vmem>>, %arg7: memref<2x64xf32, #tpu.memory_space<vmem>>) attributes {dimension_semantics = [], scalar_prefetch = 0 : i64, scratch_operands = 2 : i64, tpu.core_type = #tpu.core_type<tc>} {
    %cst = arith.constant 0.000000e+00 : f32
    %0 = vector.broadcast %cst : f32 to vector<2x64xf32>
    %c0 = arith.constant 0 : index
    %c0_0 = arith.constant 0 : index
    %1 = vector.load %arg6[%c0, %c0_0] : memref<2x64xf32, #tpu.memory_space<vmem>>, vector<2x64xf32>
    tpu.vector_store %arg6[%c0, %c0_0], %0 {strides = array<i32>} : memref<2x64xf32, #tpu.memory_space<vmem>>, vector<2x64xf32>,
    %cst_1 = arith.constant 0.000000e+00 : f32
    %2 = vector.broadcast %cst_1 : f32 to vector<2x64xf32>
    %c0_2 = arith.constant 0 : index
    %c0_3 = arith.constant 0 : index
    %3 = vector.load %arg7[%c0_2, %c0_3] : memref<2x64xf32, #tpu.memory_space<vmem>>, vector<2x64xf32>
    tpu.vector_store %arg7[%c0_2, %c0_3], %2 {strides = array<i32>} : memref<2x64xf32, #tpu.memory_space<vmem>>, vector<2x64xf32>,
    %c0_4 = arith.constant 0 : index
    %c0_5 = arith.constant 0 : index
    %4 = vector.load %arg1[%c0_4, %c0_5] : memref<64x256xf32, #tpu.memory_space<vmem>>, vector<64x256xf32>
    %5 = tpu.iota {dimensions = array<i32: 1>} : vector<2x256xi32>
    %c64_i32 = arith.constant 64 : i32
    %c0_i32 = arith.constant 0 : i32
    %6 = arith.cmpi eq, %c64_i32, %c0_i32 : i32
    %c1_i32 = arith.constant 1 : i32
    %7 = arith.select %6, %c1_i32, %c64_i32 : i32
    %8 = vector.broadcast %7 : i32 to vector<2x256xi32>
    %9 = arith.remsi %5, %8 : vector<2x256xi32>
    %c0_i32_6 = arith.constant 0 : i32
    %10 = vector.broadcast %c0_i32_6 : i32 to vector<2x256xi32>
    %11 = arith.cmpi ne, %9, %10 : vector<2x256xi32>
    %c0_i32_7 = arith.constant 0 : i32
    %12 = vector.broadcast %c0_i32_7 : i32 to vector<2x256xi32>
    %13 = arith.cmpi slt, %9, %12 : vector<2x256xi32>
    %c0_i32_8 = arith.constant 0 : i32
    %14 = arith.cmpi slt, %7, %c0_i32_8 : i32
    %15 = vector.broadcast %14 : i1 to vector<2x256xi1>
    %16 = vector.broadcast %15 : vector<2x256xi1> to vector<2x256xi1>
    %17 = arith.xori %13, %16 : vector<2x256xi1>
    %18 = arith.andi %17, %11 : vector<2x256xi1>
    %19 = vector.broadcast %7 : i32 to vector<2x256xi32>
    %20 = arith.addi %9, %19 : vector<2x256xi32>
    %21 = arith.select %18, %20, %9 : vector<2x256xi1>, vector<2x256xi32>
    %c32_i32 = arith.constant 32 : i32
    %22 = vector.broadcast %c32_i32 : i32 to vector<2x256xi32>
    %23 = arith.cmpi sge, %21, %22 : vector<2x256xi32>
    %c0_i32_9 = arith.constant 0 : i32
    %c2_i32 = arith.constant 2 : i32
    %24 = arith.addi %c0_i32_9, %c2_i32 : i32
    %c1_i32_10 = arith.constant 1 : i32
    scf.for %arg8 = %c0_i32_9 to %24 step %c1_i32_10  : i32 {
      %c4_i32 = arith.constant 4 : i32
      %29 = arith.muli %arg8, %c4_i32 : i32
      %c0_i32_20 = arith.constant 0 : i32
      %30 = arith.addi %29, %c0_i32_20 : i32
      %c0_21 = arith.constant 0 : index
      %c0_22 = arith.constant 0 : index
      %31 = vector.load %arg6[%c0_21, %c0_22] : memref<2x64xf32, #tpu.memory_space<vmem>>, vector<2x64xf32>
      %cst_23 = arith.constant dense<0.000000e+00> : vector<2x256xf32>
      %32 = tpu.matmul %31, %4, %cst_23 {dimension_numbers = #tpu.dot_dimension_numbers<[1], [0], [0], [1], [0, 0, 1, 1], [], []>} : vector<2x64xf32>, vector<64x256xf32>, vector<2x256xf32> -> vector<2x256xf32>
      %c7_i32 = arith.constant 7 : i32
      %33 = arith.subi %c7_i32, %30 : i32
      %34 = arith.index_cast %33 : i32 to index
      %c0_24 = arith.constant 0 : index
      %c0_25 = arith.constant 0 : index
      %35 = vector.load %arg0[%34, %c0_24, %c0_25] : memref<8x2x256xf32, #tpu.memory_space<vmem>>, vector<1x2x256xf32>
      %36 = vector.shape_cast %35 : vector<1x2x256xf32> to vector<2x256xf32>
      %37 = arith.index_cast %30 : i32 to index
      %c0_26 = arith.constant 0 : index
      %c0_27 = arith.constant 0 : index
      %38 = vector.load %arg0[%37, %c0_26, %c0_27] : memref<8x2x256xf32, #tpu.memory_space<vmem>>, vector<1x2x256xf32>
      %39 = vector.shape_cast %38 : vector<1x2x256xf32> to vector<2x256xf32>
      %40 = arith.select %23, %36, %39 : vector<2x256xi1>, vector<2x256xf32>
      %41 = arith.addf %40, %32 : vector<2x256xf32>
      %42 = vector.extract_strided_slice %41 {offsets = [0, 0], sizes = [2, 64], strides = [1, 1]} : vector<2x256xf32> to vector<2x64xf32>
      %43 = arith.negf %42 : vector<2x64xf32>
      %44 = math.exp %43 : vector<2x64xf32>
      %cst_28 = arith.constant 1.000000e+00 : f32
      %45 = vector.broadcast %cst_28 : f32 to vector<2x64xf32>
      %46 = arith.addf %45, %44 : vector<2x64xf32>
      %47 = arith.divf %45, %46 : vector<2x64xf32>
      %48 = vector.extract_strided_slice %41 {offsets = [0, 64], sizes = [2, 64], strides = [1, 1]} : vector<2x256xf32> to vector<2x64xf32>
      %49 = arith.negf %48 : vector<2x64xf32>
      %50 = math.exp %49 : vector<2x64xf32>
      %cst_29 = arith.constant 1.000000e+00 : f32
      %51 = vector.broadcast %cst_29 : f32 to vector<2x64xf32>
      %52 = arith.addf %51, %50 : vector<2x64xf32>
      %53 = arith.divf %51, %52 : vector<2x64xf32>
      %54 = vector.extract_strided_slice %41 {offsets = [0, 128], sizes = [2, 64], strides = [1, 1]} : vector<2x256xf32> to vector<2x64xf32>
      %55 = math.tanh %54 : vector<2x64xf32>
      %56 = vector.extract_strided_slice %41 {offsets = [0, 192], sizes = [2, 64], strides = [1, 1]} : vector<2x256xf32> to vector<2x64xf32>
      %57 = arith.negf %56 : vector<2x64xf32>
      %58 = math.exp %57 : vector<2x64xf32>
      %cst_30 = arith.constant 1.000000e+00 : f32
      %59 = vector.broadcast %cst_30 : f32 to vector<2x64xf32>
      %60 = arith.addf %59, %58 : vector<2x64xf32>
      %61 = arith.divf %59, %60 : vector<2x64xf32>
      %c0_31 = arith.constant 0 : index
      %c0_32 = arith.constant 0 : index
      %62 = vector.load %arg7[%c0_31, %c0_32] : memref<2x64xf32, #tpu.memory_space<vmem>>, vector<2x64xf32>
      %63 = arith.mulf %53, %62 : vector<2x64xf32>
      %64 = arith.mulf %47, %55 : vector<2x64xf32>
      %65 = arith.addf %63, %64 : vector<2x64xf32>
      %66 = math.tanh %65 : vector<2x64xf32>
      %67 = arith.mulf %61, %66 : vector<2x64xf32>
      %c0_33 = arith.constant 0 : index
      %c0_34 = arith.constant 0 : index
      %68 = vector.load %arg7[%c0_33, %c0_34] : memref<2x64xf32, #tpu.memory_space<vmem>>, vector<2x64xf32>
      tpu.vector_store %arg7[%c0_33, %c0_34], %65 {strides = array<i32>} : memref<2x64xf32, #tpu.memory_space<vmem>>, vector<2x64xf32>,
      %c0_35 = arith.constant 0 : index
      %c0_36 = arith.constant 0 : index
      %69 = vector.load %arg6[%c0_35, %c0_36] : memref<2x64xf32, #tpu.memory_space<vmem>>, vector<2x64xf32>
      tpu.vector_store %arg6[%c0_35, %c0_36], %67 {strides = array<i32>} : memref<2x64xf32, #tpu.memory_space<vmem>>, vector<2x64xf32>,
      %70 = vector.extract_strided_slice %67 {offsets = [0, 0], sizes = [2, 32], strides = [1, 1]} : vector<2x64xf32> to vector<2x32xf32>
      %71 = arith.index_cast %30 : i32 to index
      %c0_37 = arith.constant 0 : index
      %c0_38 = arith.constant 0 : index
      %72 = vector.load %arg2[%71, %c0_37, %c0_38] : memref<8x2x32xf32, #tpu.memory_space<vmem>>, vector<1x2x32xf32>
      %73 = vector.shape_cast %72 : vector<1x2x32xf32> to vector<2x32xf32>
      %74 = vector.shape_cast %70 : vector<2x32xf32> to vector<1x2x32xf32>
      tpu.vector_store %arg2[%71, %c0_37, %c0_38], %74 {strides = array<i32>} : memref<8x2x32xf32, #tpu.memory_space<vmem>>, vector<1x2x32xf32>,
      %75 = vector.extract_strided_slice %67 {offsets = [0, 32], sizes = [2, 32], strides = [1, 1]} : vector<2x64xf32> to vector<2x32xf32>
      %c7_i32_39 = arith.constant 7 : i32
      %76 = arith.subi %c7_i32_39, %30 : i32
      %77 = arith.index_cast %76 : i32 to index
      %c0_40 = arith.constant 0 : index
      %c0_41 = arith.constant 0 : index
      %78 = vector.load %arg3[%77, %c0_40, %c0_41] : memref<8x2x32xf32, #tpu.memory_space<vmem>>, vector<1x2x32xf32>
      %79 = vector.shape_cast %78 : vector<1x2x32xf32> to vector<2x32xf32>
      %80 = vector.shape_cast %75 : vector<2x32xf32> to vector<1x2x32xf32>
      tpu.vector_store %arg3[%77, %c0_40, %c0_41], %80 {strides = array<i32>} : memref<8x2x32xf32, #tpu.memory_space<vmem>>, vector<1x2x32xf32>,
      %c1_i32_42 = arith.constant 1 : i32
      %81 = arith.addi %29, %c1_i32_42 : i32
      %c0_43 = arith.constant 0 : index
      %c0_44 = arith.constant 0 : index
      %82 = vector.load %arg6[%c0_43, %c0_44] : memref<2x64xf32, #tpu.memory_space<vmem>>, vector<2x64xf32>
      %cst_45 = arith.constant dense<0.000000e+00> : vector<2x256xf32>
      %83 = tpu.matmul %82, %4, %cst_45 {dimension_numbers = #tpu.dot_dimension_numbers<[1], [0], [0], [1], [0, 0, 1, 1], [], []>} : vector<2x64xf32>, vector<64x256xf32>, vector<2x256xf32> -> vector<2x256xf32>
      %c7_i32_46 = arith.constant 7 : i32
      %84 = arith.subi %c7_i32_46, %81 : i32
      %85 = arith.index_cast %84 : i32 to index
      %c0_47 = arith.constant 0 : index
      %c0_48 = arith.constant 0 : index
      %86 = vector.load %arg0[%85, %c0_47, %c0_48] : memref<8x2x256xf32, #tpu.memory_space<vmem>>, vector<1x2x256xf32>
      %87 = vector.shape_cast %86 : vector<1x2x256xf32> to vector<2x256xf32>
      %88 = arith.index_cast %81 : i32 to index
      %c0_49 = arith.constant 0 : index
      %c0_50 = arith.constant 0 : index
      %89 = vector.load %arg0[%88, %c0_49, %c0_50] : memref<8x2x256xf32, #tpu.memory_space<vmem>>, vector<1x2x256xf32>
      %90 = vector.shape_cast %89 : vector<1x2x256xf32> to vector<2x256xf32>
      %91 = arith.select %23, %87, %90 : vector<2x256xi1>, vector<2x256xf32>
      %92 = arith.addf %91, %83 : vector<2x256xf32>
      %93 = vector.extract_strided_slice %92 {offsets = [0, 0], sizes = [2, 64], strides = [1, 1]} : vector<2x256xf32> to vector<2x64xf32>
      %94 = arith.negf %93 : vector<2x64xf32>
      %95 = math.exp %94 : vector<2x64xf32>
      %cst_51 = arith.constant 1.000000e+00 : f32
      %96 = vector.broadcast %cst_51 : f32 to vector<2x64xf32>
      %97 = arith.addf %96, %95 : vector<2x64xf32>
      %98 = arith.divf %96, %97 : vector<2x64xf32>
      %99 = vector.extract_strided_slice %92 {offsets = [0, 64], sizes = [2, 64], strides = [1, 1]} : vector<2x256xf32> to vector<2x64xf32>
      %100 = arith.negf %99 : vector<2x64xf32>
      %101 = math.exp %100 : vector<2x64xf32>
      %cst_52 = arith.constant 1.000000e+00 : f32
      %102 = vector.broadcast %cst_52 : f32 to vector<2x64xf32>
      %103 = arith.addf %102, %101 : vector<2x64xf32>
      %104 = arith.divf %102, %103 : vector<2x64xf32>
      %105 = vector.extract_strided_slice %92 {offsets = [0, 128], sizes = [2, 64], strides = [1, 1]} : vector<2x256xf32> to vector<2x64xf32>
      %106 = math.tanh %105 : vector<2x64xf32>
      %107 = vector.extract_strided_slice %92 {offsets = [0, 192], sizes = [2, 64], strides = [1, 1]} : vector<2x256xf32> to vector<2x64xf32>
      %108 = arith.negf %107 : vector<2x64xf32>
      %109 = math.exp %108 : vector<2x64xf32>
      %cst_53 = arith.constant 1.000000e+00 : f32
      %110 = vector.broadcast %cst_53 : f32 to vector<2x64xf32>
      %111 = arith.addf %110, %109 : vector<2x64xf32>
      %112 = arith.divf %110, %111 : vector<2x64xf32>
      %c0_54 = arith.constant 0 : index
      %c0_55 = arith.constant 0 : index
      %113 = vector.load %arg7[%c0_54, %c0_55] : memref<2x64xf32, #tpu.memory_space<vmem>>, vector<2x64xf32>
      %114 = arith.mulf %104, %113 : vector<2x64xf32>
      %115 = arith.mulf %98, %106 : vector<2x64xf32>
      %116 = arith.addf %114, %115 : vector<2x64xf32>
      %117 = math.tanh %116 : vector<2x64xf32>
      %118 = arith.mulf %112, %117 : vector<2x64xf32>
      %c0_56 = arith.constant 0 : index
      %c0_57 = arith.constant 0 : index
      %119 = vector.load %arg7[%c0_56, %c0_57] : memref<2x64xf32, #tpu.memory_space<vmem>>, vector<2x64xf32>
      tpu.vector_store %arg7[%c0_56, %c0_57], %116 {strides = array<i32>} : memref<2x64xf32, #tpu.memory_space<vmem>>, vector<2x64xf32>,
      %c0_58 = arith.constant 0 : index
      %c0_59 = arith.constant 0 : index
      %120 = vector.load %arg6[%c0_58, %c0_59] : memref<2x64xf32, #tpu.memory_space<vmem>>, vector<2x64xf32>
      tpu.vector_store %arg6[%c0_58, %c0_59], %118 {strides = array<i32>} : memref<2x64xf32, #tpu.memory_space<vmem>>, vector<2x64xf32>,
      %121 = vector.extract_strided_slice %118 {offsets = [0, 0], sizes = [2, 32], strides = [1, 1]} : vector<2x64xf32> to vector<2x32xf32>
      %122 = arith.index_cast %81 : i32 to index
      %c0_60 = arith.constant 0 : index
      %c0_61 = arith.constant 0 : index
      %123 = vector.load %arg2[%122, %c0_60, %c0_61] : memref<8x2x32xf32, #tpu.memory_space<vmem>>, vector<1x2x32xf32>
      %124 = vector.shape_cast %123 : vector<1x2x32xf32> to vector<2x32xf32>
      %125 = vector.shape_cast %121 : vector<2x32xf32> to vector<1x2x32xf32>
      tpu.vector_store %arg2[%122, %c0_60, %c0_61], %125 {strides = array<i32>} : memref<8x2x32xf32, #tpu.memory_space<vmem>>, vector<1x2x32xf32>,
      %126 = vector.extract_strided_slice %118 {offsets = [0, 32], sizes = [2, 32], strides = [1, 1]} : vector<2x64xf32> to vector<2x32xf32>
      %c7_i32_62 = arith.constant 7 : i32
      %127 = arith.subi %c7_i32_62, %81 : i32
      %128 = arith.index_cast %127 : i32 to index
      %c0_63 = arith.constant 0 : index
      %c0_64 = arith.constant 0 : index
      %129 = vector.load %arg3[%128, %c0_63, %c0_64] : memref<8x2x32xf32, #tpu.memory_space<vmem>>, vector<1x2x32xf32>
      %130 = vector.shape_cast %129 : vector<1x2x32xf32> to vector<2x32xf32>
      %131 = vector.shape_cast %126 : vector<2x32xf32> to vector<1x2x32xf32>
      tpu.vector_store %arg3[%128, %c0_63, %c0_64], %131 {strides = array<i32>} : memref<8x2x32xf32, #tpu.memory_space<vmem>>, vector<1x2x32xf32>,
      %c2_i32_65 = arith.constant 2 : i32
      %132 = arith.addi %29, %c2_i32_65 : i32
      %c0_66 = arith.constant 0 : index
      %c0_67 = arith.constant 0 : index
      %133 = vector.load %arg6[%c0_66, %c0_67] : memref<2x64xf32, #tpu.memory_space<vmem>>, vector<2x64xf32>
      %cst_68 = arith.constant dense<0.000000e+00> : vector<2x256xf32>
      %134 = tpu.matmul %133, %4, %cst_68 {dimension_numbers = #tpu.dot_dimension_numbers<[1], [0], [0], [1], [0, 0, 1, 1], [], []>} : vector<2x64xf32>, vector<64x256xf32>, vector<2x256xf32> -> vector<2x256xf32>
      %c7_i32_69 = arith.constant 7 : i32
      %135 = arith.subi %c7_i32_69, %132 : i32
      %136 = arith.index_cast %135 : i32 to index
      %c0_70 = arith.constant 0 : index
      %c0_71 = arith.constant 0 : index
      %137 = vector.load %arg0[%136, %c0_70, %c0_71] : memref<8x2x256xf32, #tpu.memory_space<vmem>>, vector<1x2x256xf32>
      %138 = vector.shape_cast %137 : vector<1x2x256xf32> to vector<2x256xf32>
      %139 = arith.index_cast %132 : i32 to index
      %c0_72 = arith.constant 0 : index
      %c0_73 = arith.constant 0 : index
      %140 = vector.load %arg0[%139, %c0_72, %c0_73] : memref<8x2x256xf32, #tpu.memory_space<vmem>>, vector<1x2x256xf32>
      %141 = vector.shape_cast %140 : vector<1x2x256xf32> to vector<2x256xf32>
      %142 = arith.select %23, %138, %141 : vector<2x256xi1>, vector<2x256xf32>
      %143 = arith.addf %142, %134 : vector<2x256xf32>
      %144 = vector.extract_strided_slice %143 {offsets = [0, 0], sizes = [2, 64], strides = [1, 1]} : vector<2x256xf32> to vector<2x64xf32>
      %145 = arith.negf %144 : vector<2x64xf32>
      %146 = math.exp %145 : vector<2x64xf32>
      %cst_74 = arith.constant 1.000000e+00 : f32
      %147 = vector.broadcast %cst_74 : f32 to vector<2x64xf32>
      %148 = arith.addf %147, %146 : vector<2x64xf32>
      %149 = arith.divf %147, %148 : vector<2x64xf32>
      %150 = vector.extract_strided_slice %143 {offsets = [0, 64], sizes = [2, 64], strides = [1, 1]} : vector<2x256xf32> to vector<2x64xf32>
      %151 = arith.negf %150 : vector<2x64xf32>
      %152 = math.exp %151 : vector<2x64xf32>
      %cst_75 = arith.constant 1.000000e+00 : f32
      %153 = vector.broadcast %cst_75 : f32 to vector<2x64xf32>
      %154 = arith.addf %153, %152 : vector<2x64xf32>
      %155 = arith.divf %153, %154 : vector<2x64xf32>
      %156 = vector.extract_strided_slice %143 {offsets = [0, 128], sizes = [2, 64], strides = [1, 1]} : vector<2x256xf32> to vector<2x64xf32>
      %157 = math.tanh %156 : vector<2x64xf32>
      %158 = vector.extract_strided_slice %143 {offsets = [0, 192], sizes = [2, 64], strides = [1, 1]} : vector<2x256xf32> to vector<2x64xf32>
      %159 = arith.negf %158 : vector<2x64xf32>
      %160 = math.exp %159 : vector<2x64xf32>
      %cst_76 = arith.constant 1.000000e+00 : f32
      %161 = vector.broadcast %cst_76 : f32 to vector<2x64xf32>
      %162 = arith.addf %161, %160 : vector<2x64xf32>
      %163 = arith.divf %161, %162 : vector<2x64xf32>
      %c0_77 = arith.constant 0 : index
      %c0_78 = arith.constant 0 : index
      %164 = vector.load %arg7[%c0_77, %c0_78] : memref<2x64xf32, #tpu.memory_space<vmem>>, vector<2x64xf32>
      %165 = arith.mulf %155, %164 : vector<2x64xf32>
      %166 = arith.mulf %149, %157 : vector<2x64xf32>
      %167 = arith.addf %165, %166 : vector<2x64xf32>
      %168 = math.tanh %167 : vector<2x64xf32>
      %169 = arith.mulf %163, %168 : vector<2x64xf32>
      %c0_79 = arith.constant 0 : index
      %c0_80 = arith.constant 0 : index
      %170 = vector.load %arg7[%c0_79, %c0_80] : memref<2x64xf32, #tpu.memory_space<vmem>>, vector<2x64xf32>
      tpu.vector_store %arg7[%c0_79, %c0_80], %167 {strides = array<i32>} : memref<2x64xf32, #tpu.memory_space<vmem>>, vector<2x64xf32>,
      %c0_81 = arith.constant 0 : index
      %c0_82 = arith.constant 0 : index
      %171 = vector.load %arg6[%c0_81, %c0_82] : memref<2x64xf32, #tpu.memory_space<vmem>>, vector<2x64xf32>
      tpu.vector_store %arg6[%c0_81, %c0_82], %169 {strides = array<i32>} : memref<2x64xf32, #tpu.memory_space<vmem>>, vector<2x64xf32>,
      %172 = vector.extract_strided_slice %169 {offsets = [0, 0], sizes = [2, 32], strides = [1, 1]} : vector<2x64xf32> to vector<2x32xf32>
      %173 = arith.index_cast %132 : i32 to index
      %c0_83 = arith.constant 0 : index
      %c0_84 = arith.constant 0 : index
      %174 = vector.load %arg2[%173, %c0_83, %c0_84] : memref<8x2x32xf32, #tpu.memory_space<vmem>>, vector<1x2x32xf32>
      %175 = vector.shape_cast %174 : vector<1x2x32xf32> to vector<2x32xf32>
      %176 = vector.shape_cast %172 : vector<2x32xf32> to vector<1x2x32xf32>
      tpu.vector_store %arg2[%173, %c0_83, %c0_84], %176 {strides = array<i32>} : memref<8x2x32xf32, #tpu.memory_space<vmem>>, vector<1x2x32xf32>,
      %177 = vector.extract_strided_slice %169 {offsets = [0, 32], sizes = [2, 32], strides = [1, 1]} : vector<2x64xf32> to vector<2x32xf32>
      %c7_i32_85 = arith.constant 7 : i32
      %178 = arith.subi %c7_i32_85, %132 : i32
      %179 = arith.index_cast %178 : i32 to index
      %c0_86 = arith.constant 0 : index
      %c0_87 = arith.constant 0 : index
      %180 = vector.load %arg3[%179, %c0_86, %c0_87] : memref<8x2x32xf32, #tpu.memory_space<vmem>>, vector<1x2x32xf32>
      %181 = vector.shape_cast %180 : vector<1x2x32xf32> to vector<2x32xf32>
      %182 = vector.shape_cast %177 : vector<2x32xf32> to vector<1x2x32xf32>
      tpu.vector_store %arg3[%179, %c0_86, %c0_87], %182 {strides = array<i32>} : memref<8x2x32xf32, #tpu.memory_space<vmem>>, vector<1x2x32xf32>,
      %c3_i32 = arith.constant 3 : i32
      %183 = arith.addi %29, %c3_i32 : i32
      %c0_88 = arith.constant 0 : index
      %c0_89 = arith.constant 0 : index
      %184 = vector.load %arg6[%c0_88, %c0_89] : memref<2x64xf32, #tpu.memory_space<vmem>>, vector<2x64xf32>
      %cst_90 = arith.constant dense<0.000000e+00> : vector<2x256xf32>
      %185 = tpu.matmul %184, %4, %cst_90 {dimension_numbers = #tpu.dot_dimension_numbers<[1], [0], [0], [1], [0, 0, 1, 1], [], []>} : vector<2x64xf32>, vector<64x256xf32>, vector<2x256xf32> -> vector<2x256xf32>
      %c7_i32_91 = arith.constant 7 : i32
      %186 = arith.subi %c7_i32_91, %183 : i32
      %187 = arith.index_cast %186 : i32 to index
      %c0_92 = arith.constant 0 : index
      %c0_93 = arith.constant 0 : index
      %188 = vector.load %arg0[%187, %c0_92, %c0_93] : memref<8x2x256xf32, #tpu.memory_space<vmem>>, vector<1x2x256xf32>
      %189 = vector.shape_cast %188 : vector<1x2x256xf32> to vector<2x256xf32>
      %190 = arith.index_cast %183 : i32 to index
      %c0_94 = arith.constant 0 : index
      %c0_95 = arith.constant 0 : index
      %191 = vector.load %arg0[%190, %c0_94, %c0_95] : memref<8x2x256xf32, #tpu.memory_space<vmem>>, vector<1x2x256xf32>
      %192 = vector.shape_cast %191 : vector<1x2x256xf32> to vector<2x256xf32>
      %193 = arith.select %23, %189, %192 : vector<2x256xi1>, vector<2x256xf32>
      %194 = arith.addf %193, %185 : vector<2x256xf32>
      %195 = vector.extract_strided_slice %194 {offsets = [0, 0], sizes = [2, 64], strides = [1, 1]} : vector<2x256xf32> to vector<2x64xf32>
      %196 = arith.negf %195 : vector<2x64xf32>
      %197 = math.exp %196 : vector<2x64xf32>
      %cst_96 = arith.constant 1.000000e+00 : f32
      %198 = vector.broadcast %cst_96 : f32 to vector<2x64xf32>
      %199 = arith.addf %198, %197 : vector<2x64xf32>
      %200 = arith.divf %198, %199 : vector<2x64xf32>
      %201 = vector.extract_strided_slice %194 {offsets = [0, 64], sizes = [2, 64], strides = [1, 1]} : vector<2x256xf32> to vector<2x64xf32>
      %202 = arith.negf %201 : vector<2x64xf32>
      %203 = math.exp %202 : vector<2x64xf32>
      %cst_97 = arith.constant 1.000000e+00 : f32
      %204 = vector.broadcast %cst_97 : f32 to vector<2x64xf32>
      %205 = arith.addf %204, %203 : vector<2x64xf32>
      %206 = arith.divf %204, %205 : vector<2x64xf32>
      %207 = vector.extract_strided_slice %194 {offsets = [0, 128], sizes = [2, 64], strides = [1, 1]} : vector<2x256xf32> to vector<2x64xf32>
      %208 = math.tanh %207 : vector<2x64xf32>
      %209 = vector.extract_strided_slice %194 {offsets = [0, 192], sizes = [2, 64], strides = [1, 1]} : vector<2x256xf32> to vector<2x64xf32>
      %210 = arith.negf %209 : vector<2x64xf32>
      %211 = math.exp %210 : vector<2x64xf32>
      %cst_98 = arith.constant 1.000000e+00 : f32
      %212 = vector.broadcast %cst_98 : f32 to vector<2x64xf32>
      %213 = arith.addf %212, %211 : vector<2x64xf32>
      %214 = arith.divf %212, %213 : vector<2x64xf32>
      %c0_99 = arith.constant 0 : index
      %c0_100 = arith.constant 0 : index
      %215 = vector.load %arg7[%c0_99, %c0_100] : memref<2x64xf32, #tpu.memory_space<vmem>>, vector<2x64xf32>
      %216 = arith.mulf %206, %215 : vector<2x64xf32>
      %217 = arith.mulf %200, %208 : vector<2x64xf32>
      %218 = arith.addf %216, %217 : vector<2x64xf32>
      %219 = math.tanh %218 : vector<2x64xf32>
      %220 = arith.mulf %214, %219 : vector<2x64xf32>
      %c0_101 = arith.constant 0 : index
      %c0_102 = arith.constant 0 : index
      %221 = vector.load %arg7[%c0_101, %c0_102] : memref<2x64xf32, #tpu.memory_space<vmem>>, vector<2x64xf32>
      tpu.vector_store %arg7[%c0_101, %c0_102], %218 {strides = array<i32>} : memref<2x64xf32, #tpu.memory_space<vmem>>, vector<2x64xf32>,
      %c0_103 = arith.constant 0 : index
      %c0_104 = arith.constant 0 : index
      %222 = vector.load %arg6[%c0_103, %c0_104] : memref<2x64xf32, #tpu.memory_space<vmem>>, vector<2x64xf32>
      tpu.vector_store %arg6[%c0_103, %c0_104], %220 {strides = array<i32>} : memref<2x64xf32, #tpu.memory_space<vmem>>, vector<2x64xf32>,
      %223 = vector.extract_strided_slice %220 {offsets = [0, 0], sizes = [2, 32], strides = [1, 1]} : vector<2x64xf32> to vector<2x32xf32>
      %224 = arith.index_cast %183 : i32 to index
      %c0_105 = arith.constant 0 : index
      %c0_106 = arith.constant 0 : index
      %225 = vector.load %arg2[%224, %c0_105, %c0_106] : memref<8x2x32xf32, #tpu.memory_space<vmem>>, vector<1x2x32xf32>
      %226 = vector.shape_cast %225 : vector<1x2x32xf32> to vector<2x32xf32>
      %227 = vector.shape_cast %223 : vector<2x32xf32> to vector<1x2x32xf32>
      tpu.vector_store %arg2[%224, %c0_105, %c0_106], %227 {strides = array<i32>} : memref<8x2x32xf32, #tpu.memory_space<vmem>>, vector<1x2x32xf32>,
      %228 = vector.extract_strided_slice %220 {offsets = [0, 32], sizes = [2, 32], strides = [1, 1]} : vector<2x64xf32> to vector<2x32xf32>
      %c7_i32_107 = arith.constant 7 : i32
      %229 = arith.subi %c7_i32_107, %183 : i32
      %230 = arith.index_cast %229 : i32 to index
      %c0_108 = arith.constant 0 : index
      %c0_109 = arith.constant 0 : index
      %231 = vector.load %arg3[%230, %c0_108, %c0_109] : memref<8x2x32xf32, #tpu.memory_space<vmem>>, vector<1x2x32xf32>
      %232 = vector.shape_cast %231 : vector<1x2x32xf32> to vector<2x32xf32>
      %233 = vector.shape_cast %228 : vector<2x32xf32> to vector<1x2x32xf32>
      tpu.vector_store %arg3[%230, %c0_108, %c0_109], %233 {strides = array<i32>} : memref<8x2x32xf32, #tpu.memory_space<vmem>>, vector<1x2x32xf32>,
    }
    %c2_i32_11 = arith.constant 2 : i32
    %c0_12 = arith.constant 0 : index
    %c0_13 = arith.constant 0 : index
    %25 = vector.load %arg6[%c0_12, %c0_13] : memref<2x64xf32, #tpu.memory_space<vmem>>, vector<2x64xf32>
    %c0_14 = arith.constant 0 : index
    %c0_15 = arith.constant 0 : index
    %26 = vector.load %arg4[%c0_14, %c0_15] : memref<2x64xf32, #tpu.memory_space<vmem>>, vector<2x64xf32>
    tpu.vector_store %arg4[%c0_14, %c0_15], %25 {strides = array<i32>} : memref<2x64xf32, #tpu.memory_space<vmem>>, vector<2x64xf32>,
    %c0_16 = arith.constant 0 : index
    %c0_17 = arith.constant 0 : index
    %27 = vector.load %arg7[%c0_16, %c0_17] : memref<2x64xf32, #tpu.memory_space<vmem>>, vector<2x64xf32>
    %c0_18 = arith.constant 0 : index
    %c0_19 = arith.constant 0 : index
    %28 = vector.load %arg5[%c0_18, %c0_19] : memref<2x64xf32, #tpu.memory_space<vmem>>, vector<2x64xf32>
    tpu.vector_store %arg5[%c0_18, %c0_19], %27 {strides = array<i32>} : memref<2x64xf32, #tpu.memory_space<vmem>>, vector<2x64xf32>,
    return
  }
}

module attributes {stable_mosaic.version = 11 : i64} {
  func.func @_lstm_recurrence_kernel(%arg0: memref<8x2x256xf32, #tpu.memory_space<vmem>>, %arg1: memref<64x256xf32, #tpu.memory_space<vmem>>, %arg2: memref<8x2x32xf32, #tpu.memory_space<vmem>>, %arg3: memref<8x2x32xf32, #tpu.memory_space<vmem>>, %arg4: memref<2x64xf32, #tpu.memory_space<vmem>>, %arg5: memref<2x64xf32, #tpu.memory_space<vmem>>, %arg6: memref<2x64xf32, #tpu.memory_space<vmem>>, %arg7: memref<2x64xf32, #tpu.memory_space<vmem>>) attributes {dimension_semantics = [], scalar_prefetch = 0 : i64, scratch_operands = 2 : i64, tpu.core_type = #tpu.core_type<tc>} {
    %cst = arith.constant 0.000000e+00 : f32
    %0 = vector.broadcast %cst : f32 to vector<2x64xf32>
    %c0 = arith.constant 0 : index
    %c0_0 = arith.constant 0 : index
    %1 = vector.load %arg6[%c0, %c0_0] : memref<2x64xf32, #tpu.memory_space<vmem>>, vector<2x64xf32>
    tpu.vector_store %arg6[%c0, %c0_0], %0 {strides = array<i32>} : memref<2x64xf32, #tpu.memory_space<vmem>>, vector<2x64xf32>,
    %cst_1 = arith.constant 0.000000e+00 : f32
    %2 = vector.broadcast %cst_1 : f32 to vector<2x64xf32>
    %c0_2 = arith.constant 0 : index
    %c0_3 = arith.constant 0 : index
    %3 = vector.load %arg7[%c0_2, %c0_3] : memref<2x64xf32, #tpu.memory_space<vmem>>, vector<2x64xf32>
    tpu.vector_store %arg7[%c0_2, %c0_3], %2 {strides = array<i32>} : memref<2x64xf32, #tpu.memory_space<vmem>>, vector<2x64xf32>,
    %c0_4 = arith.constant 0 : index
    %c0_5 = arith.constant 0 : index
    %4 = vector.load %arg1[%c0_4, %c0_5] : memref<64x256xf32, #tpu.memory_space<vmem>>, vector<64x256xf32>
    %5 = tpu.iota {dimensions = array<i32: 1>} : vector<2x256xi32>
    %c64_i32 = arith.constant 64 : i32
    %c0_i32 = arith.constant 0 : i32
    %6 = arith.cmpi eq, %c64_i32, %c0_i32 : i32
    %c1_i32 = arith.constant 1 : i32
    %7 = arith.select %6, %c1_i32, %c64_i32 : i32
    %8 = vector.broadcast %7 : i32 to vector<2x256xi32>
    %9 = arith.remsi %5, %8 : vector<2x256xi32>
    %c0_i32_6 = arith.constant 0 : i32
    %10 = vector.broadcast %c0_i32_6 : i32 to vector<2x256xi32>
    %11 = arith.cmpi ne, %9, %10 : vector<2x256xi32>
    %c0_i32_7 = arith.constant 0 : i32
    %12 = vector.broadcast %c0_i32_7 : i32 to vector<2x256xi32>
    %13 = arith.cmpi slt, %9, %12 : vector<2x256xi32>
    %c0_i32_8 = arith.constant 0 : i32
    %14 = arith.cmpi slt, %7, %c0_i32_8 : i32
    %15 = vector.broadcast %14 : i1 to vector<2x256xi1>
    %16 = vector.broadcast %15 : vector<2x256xi1> to vector<2x256xi1>
    %17 = arith.xori %13, %16 : vector<2x256xi1>
    %18 = arith.andi %17, %11 : vector<2x256xi1>
    %19 = vector.broadcast %7 : i32 to vector<2x256xi32>
    %20 = arith.addi %9, %19 : vector<2x256xi32>
    %21 = arith.select %18, %20, %9 : vector<2x256xi1>, vector<2x256xi32>
    %c32_i32 = arith.constant 32 : i32
    %22 = vector.broadcast %c32_i32 : i32 to vector<2x256xi32>
    %23 = arith.cmpi sge, %21, %22 : vector<2x256xi32>
    %c0_i32_9 = arith.constant 0 : i32
    %c2_i32 = arith.constant 2 : i32
    %24 = arith.addi %c0_i32_9, %c2_i32 : i32
    %c1_i32_10 = arith.constant 1 : i32
    scf.for %arg8 = %c0_i32_9 to %24 step %c1_i32_10  : i32 {
      %c4_i32 = arith.constant 4 : i32
      %29 = arith.muli %arg8, %c4_i32 : i32
      %c0_i32_20 = arith.constant 0 : i32
      %30 = arith.addi %29, %c0_i32_20 : i32
      %c0_21 = arith.constant 0 : index
      %c0_22 = arith.constant 0 : index
      %31 = vector.load %arg6[%c0_21, %c0_22] : memref<2x64xf32, #tpu.memory_space<vmem>>, vector<2x64xf32>
      %cst_23 = arith.constant dense<0.000000e+00> : vector<2x256xf32>
      %32 = tpu.matmul %31, %4, %cst_23 {dimension_numbers = #tpu.dot_dimension_numbers<[1], [0], [0], [1], [0, 0, 1, 1], [], []>} : vector<2x64xf32>, vector<64x256xf32>, vector<2x256xf32> -> vector<2x256xf32>
      %c7_i32 = arith.constant 7 : i32
      %33 = arith.subi %c7_i32, %30 : i32
      %34 = arith.index_cast %33 : i32 to index
      %c0_24 = arith.constant 0 : index
      %c0_25 = arith.constant 0 : index
      %35 = vector.load %arg0[%34, %c0_24, %c0_25] : memref<8x2x256xf32, #tpu.memory_space<vmem>>, vector<1x2x256xf32>
      %36 = vector.shape_cast %35 : vector<1x2x256xf32> to vector<2x256xf32>
      %37 = arith.index_cast %30 : i32 to index
      %c0_26 = arith.constant 0 : index
      %c0_27 = arith.constant 0 : index
      %38 = vector.load %arg0[%37, %c0_26, %c0_27] : memref<8x2x256xf32, #tpu.memory_space<vmem>>, vector<1x2x256xf32>
      %39 = vector.shape_cast %38 : vector<1x2x256xf32> to vector<2x256xf32>
      %40 = arith.select %23, %36, %39 : vector<2x256xi1>, vector<2x256xf32>
      %41 = arith.addf %40, %32 : vector<2x256xf32>
      %42 = vector.extract_strided_slice %41 {offsets = [0, 0], sizes = [2, 64], strides = [1, 1]} : vector<2x256xf32> to vector<2x64xf32>
      %43 = arith.negf %42 : vector<2x64xf32>
      %44 = math.exp %43 : vector<2x64xf32>
      %cst_28 = arith.constant 1.000000e+00 : f32
      %45 = vector.broadcast %cst_28 : f32 to vector<2x64xf32>
      %46 = arith.addf %45, %44 : vector<2x64xf32>
      %47 = arith.divf %45, %46 : vector<2x64xf32>
      %48 = vector.extract_strided_slice %41 {offsets = [0, 64], sizes = [2, 64], strides = [1, 1]} : vector<2x256xf32> to vector<2x64xf32>
      %49 = arith.negf %48 : vector<2x64xf32>
      %50 = math.exp %49 : vector<2x64xf32>
      %cst_29 = arith.constant 1.000000e+00 : f32
      %51 = vector.broadcast %cst_29 : f32 to vector<2x64xf32>
      %52 = arith.addf %51, %50 : vector<2x64xf32>
      %53 = arith.divf %51, %52 : vector<2x64xf32>
      %54 = vector.extract_strided_slice %41 {offsets = [0, 128], sizes = [2, 64], strides = [1, 1]} : vector<2x256xf32> to vector<2x64xf32>
      %55 = math.tanh %54 : vector<2x64xf32>
      %56 = vector.extract_strided_slice %41 {offsets = [0, 192], sizes = [2, 64], strides = [1, 1]} : vector<2x256xf32> to vector<2x64xf32>
      %57 = arith.negf %56 : vector<2x64xf32>
      %58 = math.exp %57 : vector<2x64xf32>
      %cst_30 = arith.constant 1.000000e+00 : f32
      %59 = vector.broadcast %cst_30 : f32 to vector<2x64xf32>
      %60 = arith.addf %59, %58 : vector<2x64xf32>
      %61 = arith.divf %59, %60 : vector<2x64xf32>
      %c0_31 = arith.constant 0 : index
      %c0_32 = arith.constant 0 : index
      %62 = vector.load %arg7[%c0_31, %c0_32] : memref<2x64xf32, #tpu.memory_space<vmem>>, vector<2x64xf32>
      %63 = arith.mulf %53, %62 : vector<2x64xf32>
      %64 = arith.mulf %47, %55 : vector<2x64xf32>
      %65 = arith.addf %63, %64 : vector<2x64xf32>
      %66 = math.tanh %65 : vector<2x64xf32>
      %67 = arith.mulf %61, %66 : vector<2x64xf32>
      %c0_33 = arith.constant 0 : index
      %c0_34 = arith.constant 0 : index
      %68 = vector.load %arg7[%c0_33, %c0_34] : memref<2x64xf32, #tpu.memory_space<vmem>>, vector<2x64xf32>
      tpu.vector_store %arg7[%c0_33, %c0_34], %65 {strides = array<i32>} : memref<2x64xf32, #tpu.memory_space<vmem>>, vector<2x64xf32>,
      %c0_35 = arith.constant 0 : index
      %c0_36 = arith.constant 0 : index
      %69 = vector.load %arg6[%c0_35, %c0_36] : memref<2x64xf32, #tpu.memory_space<vmem>>, vector<2x64xf32>
      tpu.vector_store %arg6[%c0_35, %c0_36], %67 {strides = array<i32>} : memref<2x64xf32, #tpu.memory_space<vmem>>, vector<2x64xf32>,
      %70 = vector.extract_strided_slice %67 {offsets = [0, 0], sizes = [2, 32], strides = [1, 1]} : vector<2x64xf32> to vector<2x32xf32>
      %71 = arith.index_cast %30 : i32 to index
      %c0_37 = arith.constant 0 : index
      %c0_38 = arith.constant 0 : index
      %72 = vector.load %arg2[%71, %c0_37, %c0_38] : memref<8x2x32xf32, #tpu.memory_space<vmem>>, vector<1x2x32xf32>
      %73 = vector.shape_cast %72 : vector<1x2x32xf32> to vector<2x32xf32>
      %74 = vector.shape_cast %70 : vector<2x32xf32> to vector<1x2x32xf32>
      tpu.vector_store %arg2[%71, %c0_37, %c0_38], %74 {strides = array<i32>} : memref<8x2x32xf32, #tpu.memory_space<vmem>>, vector<1x2x32xf32>,
      %75 = vector.extract_strided_slice %67 {offsets = [0, 32], sizes = [2, 32], strides = [1, 1]} : vector<2x64xf32> to vector<2x32xf32>
      %c7_i32_39 = arith.constant 7 : i32
      %76 = arith.subi %c7_i32_39, %30 : i32
      %77 = arith.index_cast %76 : i32 to index
      %c0_40 = arith.constant 0 : index
      %c0_41 = arith.constant 0 : index
      %78 = vector.load %arg3[%77, %c0_40, %c0_41] : memref<8x2x32xf32, #tpu.memory_space<vmem>>, vector<1x2x32xf32>
      %79 = vector.shape_cast %78 : vector<1x2x32xf32> to vector<2x32xf32>
      %80 = vector.shape_cast %75 : vector<2x32xf32> to vector<1x2x32xf32>
      tpu.vector_store %arg3[%77, %c0_40, %c0_41], %80 {strides = array<i32>} : memref<8x2x32xf32, #tpu.memory_space<vmem>>, vector<1x2x32xf32>,
      %c1_i32_42 = arith.constant 1 : i32
      %81 = arith.addi %29, %c1_i32_42 : i32
      %c0_43 = arith.constant 0 : index
      %c0_44 = arith.constant 0 : index
      %82 = vector.load %arg6[%c0_43, %c0_44] : memref<2x64xf32, #tpu.memory_space<vmem>>, vector<2x64xf32>
      %cst_45 = arith.constant dense<0.000000e+00> : vector<2x256xf32>
      %83 = tpu.matmul %82, %4, %cst_45 {dimension_numbers = #tpu.dot_dimension_numbers<[1], [0], [0], [1], [0, 0, 1, 1], [], []>} : vector<2x64xf32>, vector<64x256xf32>, vector<2x256xf32> -> vector<2x256xf32>
      %c7_i32_46 = arith.constant 7 : i32
      %84 = arith.subi %c7_i32_46, %81 : i32
      %85 = arith.index_cast %84 : i32 to index
      %c0_47 = arith.constant 0 : index
      %c0_48 = arith.constant 0 : index
      %86 = vector.load %arg0[%85, %c0_47, %c0_48] : memref<8x2x256xf32, #tpu.memory_space<vmem>>, vector<1x2x256xf32>
      %87 = vector.shape_cast %86 : vector<1x2x256xf32> to vector<2x256xf32>
      %88 = arith.index_cast %81 : i32 to index
      %c0_49 = arith.constant 0 : index
      %c0_50 = arith.constant 0 : index
      %89 = vector.load %arg0[%88, %c0_49, %c0_50] : memref<8x2x256xf32, #tpu.memory_space<vmem>>, vector<1x2x256xf32>
      %90 = vector.shape_cast %89 : vector<1x2x256xf32> to vector<2x256xf32>
      %91 = arith.select %23, %87, %90 : vector<2x256xi1>, vector<2x256xf32>
      %92 = arith.addf %91, %83 : vector<2x256xf32>
      %93 = vector.extract_strided_slice %92 {offsets = [0, 0], sizes = [2, 64], strides = [1, 1]} : vector<2x256xf32> to vector<2x64xf32>
      %94 = arith.negf %93 : vector<2x64xf32>
      %95 = math.exp %94 : vector<2x64xf32>
      %cst_51 = arith.constant 1.000000e+00 : f32
      %96 = vector.broadcast %cst_51 : f32 to vector<2x64xf32>
      %97 = arith.addf %96, %95 : vector<2x64xf32>
      %98 = arith.divf %96, %97 : vector<2x64xf32>
      %99 = vector.extract_strided_slice %92 {offsets = [0, 64], sizes = [2, 64], strides = [1, 1]} : vector<2x256xf32> to vector<2x64xf32>
      %100 = arith.negf %99 : vector<2x64xf32>
      %101 = math.exp %100 : vector<2x64xf32>
      %cst_52 = arith.constant 1.000000e+00 : f32
      %102 = vector.broadcast %cst_52 : f32 to vector<2x64xf32>
      %103 = arith.addf %102, %101 : vector<2x64xf32>
      %104 = arith.divf %102, %103 : vector<2x64xf32>
      %105 = vector.extract_strided_slice %92 {offsets = [0, 128], sizes = [2, 64], strides = [1, 1]} : vector<2x256xf32> to vector<2x64xf32>
      %106 = math.tanh %105 : vector<2x64xf32>
      %107 = vector.extract_strided_slice %92 {offsets = [0, 192], sizes = [2, 64], strides = [1, 1]} : vector<2x256xf32> to vector<2x64xf32>
      %108 = arith.negf %107 : vector<2x64xf32>
      %109 = math.exp %108 : vector<2x64xf32>
      %cst_53 = arith.constant 1.000000e+00 : f32
      %110 = vector.broadcast %cst_53 : f32 to vector<2x64xf32>
      %111 = arith.addf %110, %109 : vector<2x64xf32>
      %112 = arith.divf %110, %111 : vector<2x64xf32>
      %c0_54 = arith.constant 0 : index
      %c0_55 = arith.constant 0 : index
      %113 = vector.load %arg7[%c0_54, %c0_55] : memref<2x64xf32, #tpu.memory_space<vmem>>, vector<2x64xf32>
      %114 = arith.mulf %104, %113 : vector<2x64xf32>
      %115 = arith.mulf %98, %106 : vector<2x64xf32>
      %116 = arith.addf %114, %115 : vector<2x64xf32>
      %117 = math.tanh %116 : vector<2x64xf32>
      %118 = arith.mulf %112, %117 : vector<2x64xf32>
      %c0_56 = arith.constant 0 : index
      %c0_57 = arith.constant 0 : index
      %119 = vector.load %arg7[%c0_56, %c0_57] : memref<2x64xf32, #tpu.memory_space<vmem>>, vector<2x64xf32>
      tpu.vector_store %arg7[%c0_56, %c0_57], %116 {strides = array<i32>} : memref<2x64xf32, #tpu.memory_space<vmem>>, vector<2x64xf32>,
      %c0_58 = arith.constant 0 : index
      %c0_59 = arith.constant 0 : index
      %120 = vector.load %arg6[%c0_58, %c0_59] : memref<2x64xf32, #tpu.memory_space<vmem>>, vector<2x64xf32>
      tpu.vector_store %arg6[%c0_58, %c0_59], %118 {strides = array<i32>} : memref<2x64xf32, #tpu.memory_space<vmem>>, vector<2x64xf32>,
      %121 = vector.extract_strided_slice %118 {offsets = [0, 0], sizes = [2, 32], strides = [1, 1]} : vector<2x64xf32> to vector<2x32xf32>
      %122 = arith.index_cast %81 : i32 to index
      %c0_60 = arith.constant 0 : index
      %c0_61 = arith.constant 0 : index
      %123 = vector.load %arg2[%122, %c0_60, %c0_61] : memref<8x2x32xf32, #tpu.memory_space<vmem>>, vector<1x2x32xf32>
      %124 = vector.shape_cast %123 : vector<1x2x32xf32> to vector<2x32xf32>
      %125 = vector.shape_cast %121 : vector<2x32xf32> to vector<1x2x32xf32>
      tpu.vector_store %arg2[%122, %c0_60, %c0_61], %125 {strides = array<i32>} : memref<8x2x32xf32, #tpu.memory_space<vmem>>, vector<1x2x32xf32>,
      %126 = vector.extract_strided_slice %118 {offsets = [0, 32], sizes = [2, 32], strides = [1, 1]} : vector<2x64xf32> to vector<2x32xf32>
      %c7_i32_62 = arith.constant 7 : i32
      %127 = arith.subi %c7_i32_62, %81 : i32
      %128 = arith.index_cast %127 : i32 to index
      %c0_63 = arith.constant 0 : index
      %c0_64 = arith.constant 0 : index
      %129 = vector.load %arg3[%128, %c0_63, %c0_64] : memref<8x2x32xf32, #tpu.memory_space<vmem>>, vector<1x2x32xf32>
      %130 = vector.shape_cast %129 : vector<1x2x32xf32> to vector<2x32xf32>
      %131 = vector.shape_cast %126 : vector<2x32xf32> to vector<1x2x32xf32>
      tpu.vector_store %arg3[%128, %c0_63, %c0_64], %131 {strides = array<i32>} : memref<8x2x32xf32, #tpu.memory_space<vmem>>, vector<1x2x32xf32>,
      %c2_i32_65 = arith.constant 2 : i32
      %132 = arith.addi %29, %c2_i32_65 : i32
      %c0_66 = arith.constant 0 : index
      %c0_67 = arith.constant 0 : index
      %133 = vector.load %arg6[%c0_66, %c0_67] : memref<2x64xf32, #tpu.memory_space<vmem>>, vector<2x64xf32>
      %cst_68 = arith.constant dense<0.000000e+00> : vector<2x256xf32>
      %134 = tpu.matmul %133, %4, %cst_68 {dimension_numbers = #tpu.dot_dimension_numbers<[1], [0], [0], [1], [0, 0, 1, 1], [], []>} : vector<2x64xf32>, vector<64x256xf32>, vector<2x256xf32> -> vector<2x256xf32>
      %c7_i32_69 = arith.constant 7 : i32
      %135 = arith.subi %c7_i32_69, %132 : i32
      %136 = arith.index_cast %135 : i32 to index
      %c0_70 = arith.constant 0 : index
      %c0_71 = arith.constant 0 : index
      %137 = vector.load %arg0[%136, %c0_70, %c0_71] : memref<8x2x256xf32, #tpu.memory_space<vmem>>, vector<1x2x256xf32>
      %138 = vector.shape_cast %137 : vector<1x2x256xf32> to vector<2x256xf32>
      %139 = arith.index_cast %132 : i32 to index
      %c0_72 = arith.constant 0 : index
      %c0_73 = arith.constant 0 : index
      %140 = vector.load %arg0[%139, %c0_72, %c0_73] : memref<8x2x256xf32, #tpu.memory_space<vmem>>, vector<1x2x256xf32>
      %141 = vector.shape_cast %140 : vector<1x2x256xf32> to vector<2x256xf32>
      %142 = arith.select %23, %138, %141 : vector<2x256xi1>, vector<2x256xf32>
      %143 = arith.addf %142, %134 : vector<2x256xf32>
      %144 = vector.extract_strided_slice %143 {offsets = [0, 0], sizes = [2, 64], strides = [1, 1]} : vector<2x256xf32> to vector<2x64xf32>
      %145 = arith.negf %144 : vector<2x64xf32>
      %146 = math.exp %145 : vector<2x64xf32>
      %cst_74 = arith.constant 1.000000e+00 : f32
      %147 = vector.broadcast %cst_74 : f32 to vector<2x64xf32>
      %148 = arith.addf %147, %146 : vector<2x64xf32>
      %149 = arith.divf %147, %148 : vector<2x64xf32>
      %150 = vector.extract_strided_slice %143 {offsets = [0, 64], sizes = [2, 64], strides = [1, 1]} : vector<2x256xf32> to vector<2x64xf32>
      %151 = arith.negf %150 : vector<2x64xf32>
      %152 = math.exp %151 : vector<2x64xf32>
      %cst_75 = arith.constant 1.000000e+00 : f32
      %153 = vector.broadcast %cst_75 : f32 to vector<2x64xf32>
      %154 = arith.addf %153, %152 : vector<2x64xf32>
      %155 = arith.divf %153, %154 : vector<2x64xf32>
      %156 = vector.extract_strided_slice %143 {offsets = [0, 128], sizes = [2, 64], strides = [1, 1]} : vector<2x256xf32> to vector<2x64xf32>
      %157 = math.tanh %156 : vector<2x64xf32>
      %158 = vector.extract_strided_slice %143 {offsets = [0, 192], sizes = [2, 64], strides = [1, 1]} : vector<2x256xf32> to vector<2x64xf32>
      %159 = arith.negf %158 : vector<2x64xf32>
      %160 = math.exp %159 : vector<2x64xf32>
      %cst_76 = arith.constant 1.000000e+00 : f32
      %161 = vector.broadcast %cst_76 : f32 to vector<2x64xf32>
      %162 = arith.addf %161, %160 : vector<2x64xf32>
      %163 = arith.divf %161, %162 : vector<2x64xf32>
      %c0_77 = arith.constant 0 : index
      %c0_78 = arith.constant 0 : index
      %164 = vector.load %arg7[%c0_77, %c0_78] : memref<2x64xf32, #tpu.memory_space<vmem>>, vector<2x64xf32>
      %165 = arith.mulf %155, %164 : vector<2x64xf32>
      %166 = arith.mulf %149, %157 : vector<2x64xf32>
      %167 = arith.addf %165, %166 : vector<2x64xf32>
      %168 = math.tanh %167 : vector<2x64xf32>
      %169 = arith.mulf %163, %168 : vector<2x64xf32>
      %c0_79 = arith.constant 0 : index
      %c0_80 = arith.constant 0 : index
      %170 = vector.load %arg7[%c0_79, %c0_80] : memref<2x64xf32, #tpu.memory_space<vmem>>, vector<2x64xf32>
      tpu.vector_store %arg7[%c0_79, %c0_80], %167 {strides = array<i32>} : memref<2x64xf32, #tpu.memory_space<vmem>>, vector<2x64xf32>,
      %c0_81 = arith.constant 0 : index
      %c0_82 = arith.constant 0 : index
      %171 = vector.load %arg6[%c0_81, %c0_82] : memref<2x64xf32, #tpu.memory_space<vmem>>, vector<2x64xf32>
      tpu.vector_store %arg6[%c0_81, %c0_82], %169 {strides = array<i32>} : memref<2x64xf32, #tpu.memory_space<vmem>>, vector<2x64xf32>,
      %172 = vector.extract_strided_slice %169 {offsets = [0, 0], sizes = [2, 32], strides = [1, 1]} : vector<2x64xf32> to vector<2x32xf32>
      %173 = arith.index_cast %132 : i32 to index
      %c0_83 = arith.constant 0 : index
      %c0_84 = arith.constant 0 : index
      %174 = vector.load %arg2[%173, %c0_83, %c0_84] : memref<8x2x32xf32, #tpu.memory_space<vmem>>, vector<1x2x32xf32>
      %175 = vector.shape_cast %174 : vector<1x2x32xf32> to vector<2x32xf32>
      %176 = vector.shape_cast %172 : vector<2x32xf32> to vector<1x2x32xf32>
      tpu.vector_store %arg2[%173, %c0_83, %c0_84], %176 {strides = array<i32>} : memref<8x2x32xf32, #tpu.memory_space<vmem>>, vector<1x2x32xf32>,
      %177 = vector.extract_strided_slice %169 {offsets = [0, 32], sizes = [2, 32], strides = [1, 1]} : vector<2x64xf32> to vector<2x32xf32>
      %c7_i32_85 = arith.constant 7 : i32
      %178 = arith.subi %c7_i32_85, %132 : i32
      %179 = arith.index_cast %178 : i32 to index
      %c0_86 = arith.constant 0 : index
      %c0_87 = arith.constant 0 : index
      %180 = vector.load %arg3[%179, %c0_86, %c0_87] : memref<8x2x32xf32, #tpu.memory_space<vmem>>, vector<1x2x32xf32>
      %181 = vector.shape_cast %180 : vector<1x2x32xf32> to vector<2x32xf32>
      %182 = vector.shape_cast %177 : vector<2x32xf32> to vector<1x2x32xf32>
      tpu.vector_store %arg3[%179, %c0_86, %c0_87], %182 {strides = array<i32>} : memref<8x2x32xf32, #tpu.memory_space<vmem>>, vector<1x2x32xf32>,
      %c3_i32 = arith.constant 3 : i32
      %183 = arith.addi %29, %c3_i32 : i32
      %c0_88 = arith.constant 0 : index
      %c0_89 = arith.constant 0 : index
      %184 = vector.load %arg6[%c0_88, %c0_89] : memref<2x64xf32, #tpu.memory_space<vmem>>, vector<2x64xf32>
      %cst_90 = arith.constant dense<0.000000e+00> : vector<2x256xf32>
      %185 = tpu.matmul %184, %4, %cst_90 {dimension_numbers = #tpu.dot_dimension_numbers<[1], [0], [0], [1], [0, 0, 1, 1], [], []>} : vector<2x64xf32>, vector<64x256xf32>, vector<2x256xf32> -> vector<2x256xf32>
      %c7_i32_91 = arith.constant 7 : i32
      %186 = arith.subi %c7_i32_91, %183 : i32
      %187 = arith.index_cast %186 : i32 to index
      %c0_92 = arith.constant 0 : index
      %c0_93 = arith.constant 0 : index
      %188 = vector.load %arg0[%187, %c0_92, %c0_93] : memref<8x2x256xf32, #tpu.memory_space<vmem>>, vector<1x2x256xf32>
      %189 = vector.shape_cast %188 : vector<1x2x256xf32> to vector<2x256xf32>
      %190 = arith.index_cast %183 : i32 to index
      %c0_94 = arith.constant 0 : index
      %c0_95 = arith.constant 0 : index
      %191 = vector.load %arg0[%190, %c0_94, %c0_95] : memref<8x2x256xf32, #tpu.memory_space<vmem>>, vector<1x2x256xf32>
      %192 = vector.shape_cast %191 : vector<1x2x256xf32> to vector<2x256xf32>
      %193 = arith.select %23, %189, %192 : vector<2x256xi1>, vector<2x256xf32>
      %194 = arith.addf %193, %185 : vector<2x256xf32>
      %195 = vector.extract_strided_slice %194 {offsets = [0, 0], sizes = [2, 64], strides = [1, 1]} : vector<2x256xf32> to vector<2x64xf32>
      %196 = arith.negf %195 : vector<2x64xf32>
      %197 = math.exp %196 : vector<2x64xf32>
      %cst_96 = arith.constant 1.000000e+00 : f32
      %198 = vector.broadcast %cst_96 : f32 to vector<2x64xf32>
      %199 = arith.addf %198, %197 : vector<2x64xf32>
      %200 = arith.divf %198, %199 : vector<2x64xf32>
      %201 = vector.extract_strided_slice %194 {offsets = [0, 64], sizes = [2, 64], strides = [1, 1]} : vector<2x256xf32> to vector<2x64xf32>
      %202 = arith.negf %201 : vector<2x64xf32>
      %203 = math.exp %202 : vector<2x64xf32>
      %cst_97 = arith.constant 1.000000e+00 : f32
      %204 = vector.broadcast %cst_97 : f32 to vector<2x64xf32>
      %205 = arith.addf %204, %203 : vector<2x64xf32>
      %206 = arith.divf %204, %205 : vector<2x64xf32>
      %207 = vector.extract_strided_slice %194 {offsets = [0, 128], sizes = [2, 64], strides = [1, 1]} : vector<2x256xf32> to vector<2x64xf32>
      %208 = math.tanh %207 : vector<2x64xf32>
      %209 = vector.extract_strided_slice %194 {offsets = [0, 192], sizes = [2, 64], strides = [1, 1]} : vector<2x256xf32> to vector<2x64xf32>
      %210 = arith.negf %209 : vector<2x64xf32>
      %211 = math.exp %210 : vector<2x64xf32>
      %cst_98 = arith.constant 1.000000e+00 : f32
      %212 = vector.broadcast %cst_98 : f32 to vector<2x64xf32>
      %213 = arith.addf %212, %211 : vector<2x64xf32>
      %214 = arith.divf %212, %213 : vector<2x64xf32>
      %c0_99 = arith.constant 0 : index
      %c0_100 = arith.constant 0 : index
      %215 = vector.load %arg7[%c0_99, %c0_100] : memref<2x64xf32, #tpu.memory_space<vmem>>, vector<2x64xf32>
      %216 = arith.mulf %206, %215 : vector<2x64xf32>
      %217 = arith.mulf %200, %208 : vector<2x64xf32>
      %218 = arith.addf %216, %217 : vector<2x64xf32>
      %219 = math.tanh %218 : vector<2x64xf32>
      %220 = arith.mulf %214, %219 : vector<2x64xf32>
      %c0_101 = arith.constant 0 : index
      %c0_102 = arith.constant 0 : index
      %221 = vector.load %arg7[%c0_101, %c0_102] : memref<2x64xf32, #tpu.memory_space<vmem>>, vector<2x64xf32>
      tpu.vector_store %arg7[%c0_101, %c0_102], %218 {strides = array<i32>} : memref<2x64xf32, #tpu.memory_space<vmem>>, vector<2x64xf32>,
      %c0_103 = arith.constant 0 : index
      %c0_104 = arith.constant 0 : index
      %222 = vector.load %arg6[%c0_103, %c0_104] : memref<2x64xf32, #tpu.memory_space<vmem>>, vector<2x64xf32>
      tpu.vector_store %arg6[%c0_103, %c0_104], %220 {strides = array<i32>} : memref<2x64xf32, #tpu.memory_space<vmem>>, vector<2x64xf32>,
      %223 = vector.extract_strided_slice %220 {offsets = [0, 0], sizes = [2, 32], strides = [1, 1]} : vector<2x64xf32> to vector<2x32xf32>
      %224 = arith.index_cast %183 : i32 to index
      %c0_105 = arith.constant 0 : index
      %c0_106 = arith.constant 0 : index
      %225 = vector.load %arg2[%224, %c0_105, %c0_106] : memref<8x2x32xf32, #tpu.memory_space<vmem>>, vector<1x2x32xf32>
      %226 = vector.shape_cast %225 : vector<1x2x32xf32> to vector<2x32xf32>
      %227 = vector.shape_cast %223 : vector<2x32xf32> to vector<1x2x32xf32>
      tpu.vector_store %arg2[%224, %c0_105, %c0_106], %227 {strides = array<i32>} : memref<8x2x32xf32, #tpu.memory_space<vmem>>, vector<1x2x32xf32>,
      %228 = vector.extract_strided_slice %220 {offsets = [0, 32], sizes = [2, 32], strides = [1, 1]} : vector<2x64xf32> to vector<2x32xf32>
      %c7_i32_107 = arith.constant 7 : i32
      %229 = arith.subi %c7_i32_107, %183 : i32
      %230 = arith.index_cast %229 : i32 to index
      %c0_108 = arith.constant 0 : index
      %c0_109 = arith.constant 0 : index
      %231 = vector.load %arg3[%230, %c0_108, %c0_109] : memref<8x2x32xf32, #tpu.memory_space<vmem>>, vector<1x2x32xf32>
      %232 = vector.shape_cast %231 : vector<1x2x32xf32> to vector<2x32xf32>
      %233 = vector.shape_cast %228 : vector<2x32xf32> to vector<1x2x32xf32>
      tpu.vector_store %arg3[%230, %c0_108, %c0_109], %233 {strides = array<i32>} : memref<8x2x32xf32, #tpu.memory_space<vmem>>, vector<1x2x32xf32>,
    }
    %c2_i32_11 = arith.constant 2 : i32
    %c0_12 = arith.constant 0 : index
    %c0_13 = arith.constant 0 : index
    %25 = vector.load %arg6[%c0_12, %c0_13] : memref<2x64xf32, #tpu.memory_space<vmem>>, vector<2x64xf32>
    %c0_14 = arith.constant 0 : index
    %c0_15 = arith.constant 0 : index
    %26 = vector.load %arg4[%c0_14, %c0_15] : memref<2x64xf32, #tpu.memory_space<vmem>>, vector<2x64xf32>
    tpu.vector_store %arg4[%c0_14, %c0_15], %25 {strides = array<i32>} : memref<2x64xf32, #tpu.memory_space<vmem>>, vector<2x64xf32>,
    %c0_16 = arith.constant 0 : index
    %c0_17 = arith.constant 0 : index
    %27 = vector.load %arg7[%c0_16, %c0_17] : memref<2x64xf32, #tpu.memory_space<vmem>>, vector<2x64xf32>
    %c0_18 = arith.constant 0 : index
    %c0_19 = arith.constant 0 : index
    %28 = vector.load %arg5[%c0_18, %c0_19] : memref<2x64xf32, #tpu.memory_space<vmem>>, vector<2x64xf32>
    tpu.vector_store %arg5[%c0_18, %c0_19], %27 {strides = array<i32>} : memref<2x64xf32, #tpu.memory_space<vmem>>, vector<2x64xf32>,
    return
  }
}

</mosaic_0001>

<llo_original>
// kernel: encoder_forward.4
$region0: #{encoder_forward.4}
  #allocation0 [shape = 'u32[]', space=smem, size = 0x4, offset = 0x4, fixed_abs, tag = 'smem constant byte address 0x4 - core index']
  #allocation1 [shape = 'u32[72,128]{1,0:T(1,128)}', space=vmem, size = 0x9000, scoped, tag = 'internal scratch']
  %s0 = inlined_call_operand.vmem [shape: f32[16,32], index: 0, kind: input, shape index: {}]
  %s1 = inlined_call_operand.vmem [shape: f32[32,256], index: 1, kind: input, shape index: {}]
  %s2 = inlined_call_operand.vmem [shape: f32[1,256], index: 2, kind: input, shape index: {}]
  %s3 = inlined_call_operand.vmem [shape: f32[16,256], index: 3, kind: output, shape index: {}]
  %s4 = sld [smem:[#allocation0]]
  $region22: #{encoder_forward.4} parent=0
    _
  %s6 = ssub.s32 1, %s4
  %s7 = scalar_select 0, %s6, %s4
  // Predicated region
  $region2: #{encoder_forward.4} parent=0 // pred_check
    _
  $region3: #{encoder_forward.4} parent=0 // pred_check_branch
    %9 = sbr.rel (0) target = $region5
  $region4: #{encoder_forward.4} parent=0 // pred_region
    _
  $region5: #{encoder_forward.4} parent=0 // pred_fallthru
    _
  // Predicated region
  $region6: #{encoder_forward.4} parent=0 // pred_check
    _
  $region7: #{encoder_forward.4} parent=0 // pred_check_branch
    %11 = sbr.rel (0) target = $region9
  $region8: #{encoder_forward.4} parent=0 // pred_region
    _
  $region9: #{encoder_forward.4} parent=0 // pred_fallthru
    _
  // Predicated region
  $region10: #{encoder_forward.4} parent=0 // pred_check
    _
  $region11: #{encoder_forward.4} parent=0 // pred_check_branch
    %13 = sbr.rel (0) target = $region13
  $region12: #{encoder_forward.4} parent=0 // pred_region
    _
  $region13: #{encoder_forward.4} parent=0 // pred_fallthru
    _
  %v14 = vld [vmem:[%s2] sm:$0x3]
  %v15 = vld [vmem:[%s0] sm:$0xff]
  %v16 = vld [vmem:[%s0 + $0x8] sm:$0xff]
  %v17 = vld [vmem:[%s1] sm:$0xff]
  %v18 = vld [vmem:[%s1 + $0x8] sm:$0xff]
  %v19 = vld [vmem:[%s1 + $0x10] sm:$0xff]
  %v20 = vld [vmem:[%s1 + $0x18] sm:$0xff]
  %v21 = vld [vmem:[%s1 + $0x20] sm:$0xff]
  %v22 = vld [vmem:[%s1 + $0x28] sm:$0xff]
  %v23 = vld [vmem:[%s1 + $0x30] sm:$0xff]
  %v24 = vld [vmem:[%s1 + $0x38] sm:$0xff]
  %vm25 = vcmask 261120
  %v27 = vsel %vm25, %v15, 0
  %v30 = vsel %vm25, %v16, 0
  %32 = vmatpush.msra.mxu0 0.0
  %33 = vmatpush.msra.mxu0 0.0
  %34 = vmatpush.msra.mxu0 0.0
  %35 = vmatpush.msra.mxu0 0.0
  %36 = vmatpush.msra.mxu0 0.0
  %37 = vmatpush.msra.mxu0 0.0
  %38 = vmatpush.msra.mxu0 0.0
  %39 = vmatpush.msra.mxu0 0.0
  %40 = vmatpush.msra.mxu0 0.0
  %41 = vmatpush.msra.mxu0 0.0
  %42 = vmatpush.msra.mxu0 0.0
  %43 = vmatpush.msra.mxu0 0.0
  %44 = vmatpush.msra.mxu0 %v23
  %45 = vmatpush.msra.mxu0 %v21
  %46 = vmatpush.msra.mxu0 %v19
  %47 = vmatpush.msra.mxu0 %v17
  %48 = vmatmul.f32.gmra.mxu0 %v27
  %v49 = vpop.f32.mrf.mxu0
  %v50 = vadd.f32 0.0, %v49
  %51 = vmatmul.f32.gmra.mxu0 %v30
  %v52 = vpop.f32.mrf.mxu0
  %v53 = vadd.f32 0.0, %v52
  %54 = vdwg.mxu0
  %55 = vmatpush.msra.mxu0 0.0
  %56 = vmatpush.msra.mxu0 0.0
  %57 = vmatpush.msra.mxu0 0.0
  %58 = vmatpush.msra.mxu0 0.0
  %59 = vmatpush.msra.mxu0 0.0
  %60 = vmatpush.msra.mxu0 0.0
  %61 = vmatpush.msra.mxu0 0.0
  %62 = vmatpush.msra.mxu0 0.0
  %63 = vmatpush.msra.mxu0 0.0
  %64 = vmatpush.msra.mxu0 0.0
  %65 = vmatpush.msra.mxu0 0.0
  %66 = vmatpush.msra.mxu0 0.0
  %67 = vmatpush.msra.mxu0 %v24
  %68 = vmatpush.msra.mxu0 %v22
  %69 = vmatpush.msra.mxu0 %v20
  %70 = vmatpush.msra.mxu0 %v18
  %71 = vmatmul.f32.gmra.mxu0 %v27
  %v72 = vpop.f32.mrf.mxu0
  %v73 = vadd.f32 0.0, %v72
  %74 = vmatmul.f32.gmra.mxu0 %v30
  %v75 = vpop.f32.mrf.mxu0
  %v76 = vadd.f32 0.0, %v75
  %77 = vdwg.mxu0
  %v79 = vperm.slane %v14, 0
  %v80 = vperm.slane %v14, 1
  %v83 = vadd.f32 %v79, %v50
  %v84 = vadd.f32 %v80, %v73
  %v85 = vadd.f32 %v79, %v53
  %v86 = vadd.f32 %v80, %v76
  %87 = vst [vmem:[%s3] sm:$0xff] %v83
  %88 = vst [vmem:[%s3 + $0x8] sm:$0xff] %v84
  %89 = vst [vmem:[%s3 + $0x10] sm:$0xff] %v85
  %90 = vst [vmem:[%s3 + $0x18] sm:$0xff] %v86
  // Predicated region
  $region14: #{encoder_forward.4} parent=0 // pred_check
    _
  $region15: #{encoder_forward.4} parent=0 // pred_check_branch
    %92 = sbr.rel (0) target = $region17
  $region16: #{encoder_forward.4} parent=0 // pred_region
    _
  $region17: #{encoder_forward.4} parent=0 // pred_fallthru
    _
  // Predicated region
  $region18: #{encoder_forward.4} parent=0 // pred_check
    _
  $region19: #{encoder_forward.4} parent=0 // pred_check_branch
    %94 = sbr.rel (0) target = $region21
  $region20: #{encoder_forward.4} parent=0 // pred_region
    _
  $region21: #{encoder_forward.4} parent=0 // pred_fallthru
    _

// kernel: encoder_forward.6
$region0: #{encoder_forward.6}
  #allocation0 [shape = 'u32[]', space=smem, size = 0x4, offset = 0x4, fixed_abs, tag = 'smem constant byte address 0x4 - core index']
  #allocation1 [shape = 'u32[72,128]{1,0:T(1,128)}', space=vmem, size = 0x9000, scoped, tag = 'internal scratch']
  %s0 = inlined_call_operand.vmem [shape: f32[16,32], index: 0, kind: input, shape index: {}]
  %s1 = inlined_call_operand.vmem [shape: f32[16,32], index: 1, kind: input, shape index: {}]
  %s2 = inlined_call_operand.vmem [shape: f32[32,256], index: 2, kind: input, shape index: {}]
  %s3 = inlined_call_operand.hbm [shape: f32[32,256], index: 3, kind: input, shape index: {}]
  %s4 = inlined_call_operand.vmem [shape: f32[1,256], index: 4, kind: input, shape index: {}]
  %s5 = inlined_call_operand.vmem [shape: f32[16,256], index: 5, kind: output, shape index: {}]
  %s6 = sld [smem:[#allocation0]]
  $region34: #{encoder_forward.6} parent=0
    _
  %s8 = ssub.s32 1, %s6
  %s9 = scalar_select 0, %s8, %s6
  $region1: #{encoder_forward.6} parent=0
    #allocation2 [shape = 'u8[32768]{0}', space=vmem, size = 0x8000, scoped, tag = 'input window, operand 3, single buffered']
    #allocation3 [shape = 's32[1]{0}', space=sflag, size = 0x4, scoped, tag = 'scoped memory for encoder_forward.6']
    %10 = vsyncpa [#allocation3], 0
    // Predicated region
    $region2: #{encoder_forward.6} parent=1 // pred_check
      _
    $region3: #{encoder_forward.6} parent=1 // pred_check_branch
      %12 = sbr.rel (0) target = $region5
    $region4: #{encoder_forward.6} parent=1 // pred_region
      _
    $region5: #{encoder_forward.6} parent=1 // pred_fallthru
      _
    // Predicated region
    $region6: #{encoder_forward.6} parent=1 // pred_check
      _
    $region7: #{encoder_forward.6} parent=1 // pred_check_branch
      %14 = sbr.rel (0) target = $region9
    $region8: #{encoder_forward.6} parent=1 // pred_region
      _
    $region9: #{encoder_forward.6} parent=1 // pred_fallthru
      _
    // Predicated region
    $region10: #{encoder_forward.6} parent=1 // pred_check
      _
    $region11: #{encoder_forward.6} parent=1 // pred_check_branch
      %16 = sbr.rel (0) target = $region13
    $region12: #{encoder_forward.6} parent=1 // pred_region
      _
    $region13: #{encoder_forward.6} parent=1 // pred_fallthru
      _
    // Predicated region
    $region14: #{encoder_forward.6} parent=1 // pred_check
      _
    $region15: #{encoder_forward.6} parent=1 // pred_check_branch
      %18 = sbr.rel (0) target = $region17
    $region16: #{encoder_forward.6} parent=1 // pred_region
      %20 = vsyncadd [#allocation3], 0
      %s21 = sshll.u32 %s3, 4
      %s22 = int_to_ptr.hbm [resolvable:$true] %s21
      %s23 = sshll.u32 [#allocation2], 4
      %s24 = int_to_ptr.vmem [resolvable:$true] %s23
      %29 = dma.hbm_to_vmem [thread:$0]  %s22, 1024, %s24, [#allocation3], 256, 256, 16
    $region17: #{encoder_forward.6} parent=1 // pred_fallthru
      _
    // Predicated region
    $region18: #{encoder_forward.6} parent=1 // pred_check
      _
    $region19: #{encoder_forward.6} parent=1 // pred_check_branch
      %31 = sbr.rel (0) target = $region21
    $region20: #{encoder_forward.6} parent=1 // pred_region
      _
    $region21: #{encoder_forward.6} parent=1 // pred_fallthru
      _
    // Predicated region
    $region22: #{encoder_forward.6} parent=1 // pred_check
      _
    $region23: #{encoder_forward.6} parent=1 // pred_check_branch
      %33 = sbr.rel (0) target = $region25
    $region24: #{encoder_forward.6} parent=1 // pred_region
      %35 = dma.done [#allocation3], 1024
    $region25: #{encoder_forward.6} parent=1 // pred_fallthru
      _
    %v36 = vld [vmem:[%s4] sm:$0x3]
    %v37 = vld [vmem:[%s0] sm:$0xff]
    %v38 = vld [vmem:[%s0 + $0x8] sm:$0xff]
    %v39 = vld [vmem:[%s2] sm:$0xff]
    %v40 = vld [vmem:[%s2 + $0x8] sm:$0xff]
    %v41 = vld [vmem:[%s2 + $0x10] sm:$0xff]
    %v42 = vld [vmem:[%s2 + $0x18] sm:$0xff]
    %v43 = vld [vmem:[%s2 + $0x20] sm:$0xff]
    %v44 = vld [vmem:[%s2 + $0x28] sm:$0xff]
    %v45 = vld [vmem:[%s2 + $0x30] sm:$0xff]
    %v46 = vld [vmem:[%s2 + $0x38] sm:$0xff]
    %vm47 = vcmask 261120
    %v49 = vsel %vm47, %v37, 0
    %v52 = vsel %vm47, %v38, 0
    %54 = vmatpush.msra.mxu0 0.0
    %55 = vmatpush.msra.mxu0 0.0
    %56 = vmatpush.msra.mxu0 0.0
    %57 = vmatpush.msra.mxu0 0.0
    %58 = vmatpush.msra.mxu0 0.0
    %59 = vmatpush.msra.mxu0 0.0
    %60 = vmatpush.msra.mxu0 0.0
    %61 = vmatpush.msra.mxu0 0.0
    %62 = vmatpush.msra.mxu0 0.0
    %63 = vmatpush.msra.mxu0 0.0
    %64 = vmatpush.msra.mxu0 0.0
    %65 = vmatpush.msra.mxu0 0.0
    %66 = vmatpush.msra.mxu0 %v45
    %67 = vmatpush.msra.mxu0 %v43
    %68 = vmatpush.msra.mxu0 %v41
    %69 = vmatpush.msra.mxu0 %v39
    %70 = vmatmul.f32.gmra.mxu0 %v49
    %v71 = vpop.f32.mrf.mxu0
    %v72 = vadd.f32 0.0, %v71
    %73 = vmatmul.f32.gmra.mxu0 %v52
    %v74 = vpop.f32.mrf.mxu0
    %v75 = vadd.f32 0.0, %v74
    %76 = vdwg.mxu0
    %77 = vmatpush.msra.mxu0 0.0
    %78 = vmatpush.msra.mxu0 0.0
    %79 = vmatpush.msra.mxu0 0.0
    %80 = vmatpush.msra.mxu0 0.0
    %81 = vmatpush.msra.mxu0 0.0
    %82 = vmatpush.msra.mxu0 0.0
    %83 = vmatpush.msra.mxu0 0.0
    %84 = vmatpush.msra.mxu0 0.0
    %85 = vmatpush.msra.mxu0 0.0
    %86 = vmatpush.msra.mxu0 0.0
    %87 = vmatpush.msra.mxu0 0.0
    %88 = vmatpush.msra.mxu0 0.0
    %89 = vmatpush.msra.mxu0 %v46
    %90 = vmatpush.msra.mxu0 %v44
    %91 = vmatpush.msra.mxu0 %v42
    %92 = vmatpush.msra.mxu0 %v40
    %93 = vmatmul.f32.gmra.mxu0 %v49
    %v94 = vpop.f32.mrf.mxu0
    %v95 = vadd.f32 0.0, %v94
    %96 = vmatmul.f32.gmra.mxu0 %v52
    %v97 = vpop.f32.mrf.mxu0
    %v98 = vadd.f32 0.0, %v97
    %99 = vdwg.mxu0
    %v101 = vperm.slane %v36, 0
    %v102 = vperm.slane %v36, 1
    %v105 = vadd.f32 %v101, %v72
    %v106 = vadd.f32 %v102, %v95
    %v107 = vadd.f32 %v101, %v75
    %v108 = vadd.f32 %v102, %v98
    %v109 = vld [vmem:[%s1] sm:$0xff]
    %v110 = vld [vmem:[%s1 + $0x8] sm:$0xff]
    %v111 = vld [vmem:[#allocation2] sm:$0xff]
    %v112 = vld [vmem:[#allocation2 + $0x8] sm:$0xff]
    %v113 = vld [vmem:[#allocation2 + $0x10] sm:$0xff]
    %v114 = vld [vmem:[#allocation2 + $0x18] sm:$0xff]
    %v115 = vld [vmem:[#allocation2 + $0x20] sm:$0xff]
    %v116 = vld [vmem:[#allocation2 + $0x28] sm:$0xff]
    %v117 = vld [vmem:[#allocation2 + $0x30] sm:$0xff]
    %v118 = vld [vmem:[#allocation2 + $0x38] sm:$0xff]
    %v120 = vsel %vm47, %v109, 0
    %v123 = vsel %vm47, %v110, 0
    %125 = vmatpush.msra.mxu0 0.0
    %126 = vmatpush.msra.mxu0 0.0
    %127 = vmatpush.msra.mxu0 0.0
    %128 = vmatpush.msra.mxu0 0.0
    %129 = vmatpush.msra.mxu0 0.0
    %130 = vmatpush.msra.mxu0 0.0
    %131 = vmatpush.msra.mxu0 0.0
    %132 = vmatpush.msra.mxu0 0.0
    %133 = vmatpush.msra.mxu0 0.0
    %134 = vmatpush.msra.mxu0 0.0
    %135 = vmatpush.msra.mxu0 0.0
    %136 = vmatpush.msra.mxu0 0.0
    %137 = vmatpush.msra.mxu0 %v117
    %138 = vmatpush.msra.mxu0 %v115
    %139 = vmatpush.msra.mxu0 %v113
    %140 = vmatpush.msra.mxu0 %v111
    %141 = vmatmul.f32.gmra.mxu0 %v120
    %v142 = vpop.f32.mrf.mxu0
    %v143 = vadd.f32 0.0, %v142
    %144 = vmatmul.f32.gmra.mxu0 %v123
    %v145 = vpop.f32.mrf.mxu0
    %v146 = vadd.f32 0.0, %v145
    %147 = vdwg.mxu0
    %148 = vmatpush.msra.mxu0 0.0
    %149 = vmatpush.msra.mxu0 0.0
    %150 = vmatpush.msra.mxu0 0.0
    %151 = vmatpush.msra.mxu0 0.0
    %152 = vmatpush.msra.mxu0 0.0
    %153 = vmatpush.msra.mxu0 0.0
    %154 = vmatpush.msra.mxu0 0.0
    %155 = vmatpush.msra.mxu0 0.0
    %156 = vmatpush.msra.mxu0 0.0
    %157 = vmatpush.msra.mxu0 0.0
    %158 = vmatpush.msra.mxu0 0.0
    %159 = vmatpush.msra.mxu0 0.0
    %160 = vmatpush.msra.mxu0 %v118
    %161 = vmatpush.msra.mxu0 %v116
    %162 = vmatpush.msra.mxu0 %v114
    %163 = vmatpush.msra.mxu0 %v112
    %164 = vmatmul.f32.gmra.mxu0 %v120
    %v165 = vpop.f32.mrf.mxu0
    %v166 = vadd.f32 0.0, %v165
    %167 = vmatmul.f32.gmra.mxu0 %v123
    %v168 = vpop.f32.mrf.mxu0
    %v169 = vadd.f32 0.0, %v168
    %170 = vdwg.mxu0
    %v171 = vadd.f32 %v105, %v143
    %v172 = vadd.f32 %v106, %v166
    %v173 = vadd.f32 %v107, %v146
    %v174 = vadd.f32 %v108, %v169
    %175 = vst [vmem:[%s5] sm:$0xff] %v171
    %176 = vst [vmem:[%s5 + $0x8] sm:$0xff] %v172
    %177 = vst [vmem:[%s5 + $0x10] sm:$0xff] %v173
    %178 = vst [vmem:[%s5 + $0x18] sm:$0xff] %v174
    // Predicated region
    $region26: #{encoder_forward.6} parent=1 // pred_check
      _
    $region27: #{encoder_forward.6} parent=1 // pred_check_branch
      %180 = sbr.rel (0) target = $region29
    $region28: #{encoder_forward.6} parent=1 // pred_region
      _
    $region29: #{encoder_forward.6} parent=1 // pred_fallthru
      _
    // Predicated region
    $region30: #{encoder_forward.6} parent=1 // pred_check
      _
    $region31: #{encoder_forward.6} parent=1 // pred_check_branch
      %182 = sbr.rel (0) target = $region33
    $region32: #{encoder_forward.6} parent=1 // pred_region
      _
    $region33: #{encoder_forward.6} parent=1 // pred_fallthru
      _
    %183 = vsyncpa [#allocation3], 1

// kernel: encoder_forward.5
$region0: #{encoder_forward.5}
  #allocation0 [shape = 'u32[]', space=smem, size = 0x4, offset = 0x4, fixed_abs, tag = 'smem constant byte address 0x4 - core index']
  #allocation1 [shape = 'u32[72,128]{1,0:T(1,128)}', space=vmem, size = 0x9000, scoped, tag = 'internal scratch']
  #allocation2 [shape = 'f32[2,64]{1,0:T(2,128)}', space=vmem, size = 0x400, scoped, tag = 'scratch operand']
  #allocation3 [shape = 'f32[2,64]{1,0:T(2,128)}', space=vmem, size = 0x400, scoped, tag = 'scratch operand']
  %s0 = inlined_call_operand.vmem [shape: f32[8,2,256], index: 0, kind: input, shape index: {}]
  %s1 = inlined_call_operand.vmem [shape: f32[64,256], index: 1, kind: input, shape index: {}]
  %s2 = inlined_call_operand.vmem [shape: f32[8,2,32], index: 2, kind: output, shape index: {0}]
  %s3 = inlined_call_operand.vmem [shape: f32[8,2,32], index: 3, kind: output, shape index: {1}]
  %s4 = inlined_call_operand.vmem [shape: f32[2,64], index: 4, kind: output, shape index: {2}]
  %s5 = inlined_call_operand.vmem [shape: f32[2,64], index: 5, kind: output, shape index: {3}]
  %6 = xla_tuple %s2, %s3, %s4, %s5
  %s7 = sld [smem:[#allocation0]]
  $region49: #{encoder_forward.5} parent=0
    _
  %s9 = ssub.s32 1, %s7
  %s10 = scalar_select 0, %s9, %s7
  // Predicated region
  $region2: #{encoder_forward.5} parent=0 // pred_check
    _
  $region3: #{encoder_forward.5} parent=0 // pred_check_branch
    %12 = sbr.rel (0) target = $region5
  $region4: #{encoder_forward.5} parent=0 // pred_region
    _
  $region5: #{encoder_forward.5} parent=0 // pred_fallthru
    _
  // Predicated region
  $region6: #{encoder_forward.5} parent=0 // pred_check
    _
  $region7: #{encoder_forward.5} parent=0 // pred_check_branch
    %14 = sbr.rel (0) target = $region9
  $region8: #{encoder_forward.5} parent=0 // pred_region
    _
  $region9: #{encoder_forward.5} parent=0 // pred_fallthru
    _
  %vm15 = vcmask 517120
  %16 = vst.msk [vmem:[#allocation2] sm:$0x3] %vm15, 0.0
  %17 = vst.msk [vmem:[#allocation3] sm:$0x3] %vm15, 0.0
  %v18 = vld [vmem:[%s1] sm:$0xff]
  %v19 = vld [vmem:[%s1 + $0x8] sm:$0xff]
  %v20 = vld [vmem:[%s1 + $0x10] sm:$0xff]
  %v21 = vld [vmem:[%s1 + $0x18] sm:$0xff]
  %v22 = vld [vmem:[%s1 + $0x20] sm:$0xff]
  %v23 = vld [vmem:[%s1 + $0x28] sm:$0xff]
  %v24 = vld [vmem:[%s1 + $0x30] sm:$0xff]
  %v25 = vld [vmem:[%s1 + $0x38] sm:$0xff]
  %v26 = vld [vmem:[%s1 + $0x40] sm:$0xff]
  %v27 = vld [vmem:[%s1 + $0x48] sm:$0xff]
  %v28 = vld [vmem:[%s1 + $0x50] sm:$0xff]
  %v29 = vld [vmem:[%s1 + $0x58] sm:$0xff]
  %v30 = vld [vmem:[%s1 + $0x60] sm:$0xff]
  %v31 = vld [vmem:[%s1 + $0x68] sm:$0xff]
  %v32 = vld [vmem:[%s1 + $0x70] sm:$0xff]
  %v33 = vld [vmem:[%s1 + $0x78] sm:$0xff]
  %v34 = vlaneseq
  %v35 = vand.u32 %v34, 127
  %v36 = vadd.s32 %v35, 128
  %vm37 = vcmp.lt.s32.totalorder %v35, 0
  %v38 = vsub.s32 0, %v35
  %v39 = vsel %vm37, %v38, %v35
  %v40 = vshrl.u32 %v39, 6
  %v41 = vand.u32 %v39, 63
  %v42 = vsub.s32 0, %v41
  %v43 = vsel %vm37, %v42, %v41
  %vm44 = vcmp.lt.s32.totalorder %v36, 0
  %v45 = vsub.s32 0, %v36
  %v46 = vsel %vm44, %v45, %v36
  %v47 = vshrl.u32 %v46, 6
  %v48 = vand.u32 %v46, 63
  %v49 = vsub.s32 0, %v48
  %v50 = vsel %vm44, %v49, %v48
  %vm51 = vcmp.ne.s32.totalorder %v43, 0
  %vm52 = vcmp.ne.s32.totalorder %v50, 0
  %vm53 = vcmp.lt.s32.totalorder %v43, 0
  %vm54 = vcmp.lt.s32.totalorder %v50, 0
  %vm55 = vmand %vm53, %vm51
  %vm56 = vmand %vm54, %vm52
  %v57 = vadd.s32 %v43, 64
  %v58 = vadd.s32 %v50, 64
  %v59 = vsel %vm55, %v57, %v43
  %v60 = vsel %vm56, %v58, %v50
  %vm61 = vcmp.ge.s32.totalorder %v59, 32
  %vm62 = vcmp.ge.s32.totalorder %v60, 32
  loop: start=0, step=1, limit=2
  $region10: #{encoder_forward.5} parent=0 // loop_pre_header
    _
  $region11: #{encoder_forward.5} parent=0 // loop_header
    %s64 = sphi 0, %s68
    %p65 = scmp.ge.s32.totalorder %s64, 2
  $region12: #{encoder_forward.5} parent=0 // loop_header_branch
    %67 = sbr.rel (%p65) target = $region16
  $region13: #{encoder_forward.5} parent=0 // loop_body
    %s69 = smul.u32 %s64, 4
    %v70 = vld [vmem:[#allocation2] sm:$0x3]
    %vm71 = vcmask 523264
    %v73 = vsel %vm71, %v70, 0
    %75 = vmatpush.msra.mxu0 0.0
    %76 = vmatpush.msra.mxu0 0.0
    %77 = vmatpush.msra.mxu0 0.0
    %78 = vmatpush.msra.mxu0 0.0
    %79 = vmatpush.msra.mxu0 0.0
    %80 = vmatpush.msra.mxu0 0.0
    %81 = vmatpush.msra.mxu0 0.0
    %82 = vmatpush.msra.mxu0 0.0
    %83 = vmatpush.msra.mxu0 %v32
    %84 = vmatpush.msra.mxu0 %v30
    %85 = vmatpush.msra.mxu0 %v28
    %86 = vmatpush.msra.mxu0 %v26
    %87 = vmatpush.msra.mxu0 %v24
    %88 = vmatpush.msra.mxu0 %v22
    %89 = vmatpush.msra.mxu0 %v20
    %90 = vmatpush.msra.mxu0 %v18
    %91 = vmatmul.f32.gmra.mxu0 %v73
    %v92 = vpop.f32.mrf.mxu0
    %v93 = vadd.f32 0.0, %v92
    %94 = vdwg.mxu0
    %95 = vmatpush.msra.mxu0 0.0
    %96 = vmatpush.msra.mxu0 0.0
    %97 = vmatpush.msra.mxu0 0.0
    %98 = vmatpush.msra.mxu0 0.0
    %99 = vmatpush.msra.mxu0 0.0
    %100 = vmatpush.msra.mxu0 0.0
    %101 = vmatpush.msra.mxu0 0.0
    %102 = vmatpush.msra.mxu0 0.0
    %103 = vmatpush.msra.mxu0 %v33
    %104 = vmatpush.msra.mxu0 %v31
    %105 = vmatpush.msra.mxu0 %v29
    %106 = vmatpush.msra.mxu0 %v27
    %107 = vmatpush.msra.mxu0 %v25
    %108 = vmatpush.msra.mxu0 %v23
    %109 = vmatpush.msra.mxu0 %v21
    %110 = vmatpush.msra.mxu0 %v19
    %111 = vmatmul.f32.gmra.mxu0 %v73
    %v112 = vpop.f32.mrf.mxu0
    %v113 = vadd.f32 0.0, %v112
    %114 = vdwg.mxu0
    %s115 = ssub.s32 7, %s69
    %s116 = smul.u32 %s115, 2
    %s117 = smul.addr %s116, 2
    %s118 = scalar_lea.vmem %s0, %s117
    %v119 = vld [vmem:[%s118] sm:$0xf]
    %s120 = smul.u32 %s69, 2
    %s121 = smul.addr %s120, 2
    %s122 = scalar_lea.vmem %s0, %s121
    %v123 = vld [vmem:[%s122] sm:$0xf]
    %125 = vst [vmem:[#allocation1] ss:$4 sm:$0xff] %v119
    %v126 = vld.sshfl [vmem:[#allocation1] sm:$0xff pattern:$0x73625140]
    %v127 = vld.sshfl [vmem:[#allocation1 + $0x8] sm:$0xff pattern:$0x73625140]
    %131 = vst [vmem:[#allocation1] ss:$4 sm:$0xff] %v123
    %v132 = vld.sshfl [vmem:[#allocation1] sm:$0xff pattern:$0x73625140]
    %v133 = vld.sshfl [vmem:[#allocation1 + $0x8] sm:$0xff pattern:$0x73625140]
    %v136 = vsel %vm61, %v126, %v132
    %v137 = vsel %vm62, %v127, %v133
    %v138 = vadd.f32 %v136, %v93
    %v139 = vadd.f32 %v137, %v113
    %v140 = vxor.u32 %v138, 2147483648
    %v141 = vmul.f32 %v140, 1.442695
    %v142 = vpow.pop %v141
    %v143 = vadd.f32 %v142, 1.0
    %v144 = vrcp.pop %v143
    %v145 = vmul.f32 %v143, %v144
    %v146 = vsub.f32 1.0, %v145
    %v147 = vmul.f32 %v144, %v146
    %v148 = vadd.f32 %v144, %v147
    %vm149 = vweird.f32 %v143
    %vm150 = vweird.f32 %v144
    %vm151 = vmor %vm149, %vm150
    %v152 = vsel %vm151, %v144, %v148
    %v153 = vand.u32 2147483647, %v143
    %vm154 = vcmp.eq.f32.partialorder %v153, 8.507059e+37
    %v155 = vand.u32 %v143, 2147483648
    %v156 = vor.u32 1.1754944e-38, %v155
    %v157 = vsel %vm154, %v156, %v152
    %v158 = vmul.f32 1.0, %v157
    %v159 = vtanh.pop %v139
    %v160 = vxor.u32 %v139, 2147483648
    %v161 = vmul.f32 %v160, 1.442695
    %v162 = vpow.pop %v161
    %v163 = vadd.f32 %v162, 1.0
    %v164 = vrcp.pop %v163
    %v165 = vmul.f32 %v163, %v164
    %v166 = vsub.f32 1.0, %v165
    %v167 = vmul.f32 %v164, %v166
    %v168 = vadd.f32 %v164, %v167
    %vm169 = vweird.f32 %v163
    %vm170 = vweird.f32 %v164
    %vm171 = vmor %vm169, %vm170
    %v172 = vsel %vm171, %v164, %v168
    %v173 = vand.u32 2147483647, %v163
    %vm174 = vcmp.eq.f32.partialorder %v173, 8.507059e+37
    %v175 = vand.u32 %v163, 2147483648
    %v176 = vor.u32 1.1754944e-38, %v175
    %v177 = vsel %vm174, %v176, %v172
    %v178 = vmul.f32 1.0, %v177
    %v179 = vld [vmem:[#allocation3] sm:$0x3]
    %181 = vrot.lane.b32.xlu0 %v179, 64
    %v182 = vpop.permute.xlu0 %181
    %v184 = vmul.f32 %v158, %v182
    %v185 = vmul.f32 %v158, %v159
    %187 = vrot.lane.b32.xlu0 %v185, 64
    %v188 = vpop.permute.xlu0 %187
    %v190 = vadd.f32 %v184, %v188
    %v191 = vtanh.pop %v190
    %v192 = vmul.f32 %v178, %v191
    %194 = vrot.lane.b32.xlu0 %v190, 64
    %v195 = vpop.permute.xlu0 %194
    %197 = vst.msk [vmem:[#allocation3] sm:$0x3] %vm15, %v195
    %199 = vrot.lane.b32.xlu0 %v192, 64
    %v200 = vpop.permute.xlu0 %199
    %202 = vst.msk [vmem:[#allocation2] sm:$0x3] %vm15, %v200
    %s203 = scalar_lea.vmem %s2, %s120
    %vm204 = vcmask 254976
    %205 = vst.msk [vmem:[%s203] sm:$0x3] %vm204, %v200
    %206 = vrot.lane.b32.xlu0 %v192, 32
    %v207 = vpop.permute.xlu0 %206
    %s209 = scalar_lea.vmem %s3, %s116
    %210 = vst.msk [vmem:[%s209] sm:$0x3] %vm204, %v207
    %s211 = sadd.s32 %s69, 1
    %v212 = vld [vmem:[#allocation2] sm:$0x3]
    %v214 = vsel %vm71, %v212, 0
    %216 = vmatpush.msra.mxu0 0.0
    %217 = vmatpush.msra.mxu0 0.0
    %218 = vmatpush.msra.mxu0 0.0
    %219 = vmatpush.msra.mxu0 0.0
    %220 = vmatpush.msra.mxu0 0.0
    %221 = vmatpush.msra.mxu0 0.0
    %222 = vmatpush.msra.mxu0 0.0
    %223 = vmatpush.msra.mxu0 0.0
    %224 = vmatpush.msra.mxu0 %v32
    %225 = vmatpush.msra.mxu0 %v30
    %226 = vmatpush.msra.mxu0 %v28
    %227 = vmatpush.msra.mxu0 %v26
    %228 = vmatpush.msra.mxu0 %v24
    %229 = vmatpush.msra.mxu0 %v22
    %230 = vmatpush.msra.mxu0 %v20
    %231 = vmatpush.msra.mxu0 %v18
    %232 = vmatmul.f32.gmra.mxu0 %v214
    %v233 = vpop.f32.mrf.mxu0
    %v234 = vadd.f32 0.0, %v233
    %235 = vdwg.mxu0
    %236 = vmatpush.msra.mxu0 0.0
    %237 = vmatpush.msra.mxu0 0.0
    %238 = vmatpush.msra.mxu0 0.0
    %239 = vmatpush.msra.mxu0 0.0
    %240 = vmatpush.msra.mxu0 0.0
    %241 = vmatpush.msra.mxu0 0.0
    %242 = vmatpush.msra.mxu0 0.0
    %243 = vmatpush.msra.mxu0 0.0
    %244 = vmatpush.msra.mxu0 %v33
    %245 = vmatpush.msra.mxu0 %v31
    %246 = vmatpush.msra.mxu0 %v29
    %247 = vmatpush.msra.mxu0 %v27
    %248 = vmatpush.msra.mxu0 %v25
    %249 = vmatpush.msra.mxu0 %v23
    %250 = vmatpush.msra.mxu0 %v21
    %251 = vmatpush.msra.mxu0 %v19
    %252 = vmatmul.f32.gmra.mxu0 %v214
    %v253 = vpop.f32.mrf.mxu0
    %v254 = vadd.f32 0.0, %v253
    %255 = vdwg.mxu0
    %s256 = ssub.s32 6, %s69
    %s257 = smul.u32 %s256, 2
    %s258 = smul.addr %s257, 2
    %s259 = scalar_lea.vmem %s0, %s258
    %v260 = vld [vmem:[%s259] sm:$0xf]
    %s261 = smul.u32 %s211, 2
    %s262 = smul.addr %s261, 2
    %s263 = scalar_lea.vmem %s0, %s262
    %v264 = vld [vmem:[%s263] sm:$0xf]
    %266 = vst [vmem:[#allocation1] ss:$4 sm:$0xff] %v260
    %v267 = vld.sshfl [vmem:[#allocation1] sm:$0xff pattern:$0x73625140]
    %v268 = vld.sshfl [vmem:[#allocation1 + $0x8] sm:$0xff pattern:$0x73625140]
    %272 = vst [vmem:[#allocation1] ss:$4 sm:$0xff] %v264
    %v273 = vld.sshfl [vmem:[#allocation1] sm:$0xff pattern:$0x73625140]
    %v274 = vld.sshfl [vmem:[#allocation1 + $0x8] sm:$0xff pattern:$0x73625140]
    %v277 = vsel %vm61, %v267, %v273
    %v278 = vsel %vm62, %v268, %v274
    %v279 = vadd.f32 %v277, %v234
    %v280 = vadd.f32 %v278, %v254
    %v281 = vxor.u32 %v279, 2147483648
    %v282 = vmul.f32 %v281, 1.442695
    %v283 = vpow.pop %v282
    %v284 = vadd.f32 %v283, 1.0
    %v285 = vrcp.pop %v284
    %v286 = vmul.f32 %v284, %v285
    %v287 = vsub.f32 1.0, %v286
    %v288 = vmul.f32 %v285, %v287
    %v289 = vadd.f32 %v285, %v288
    %vm290 = vweird.f32 %v284
    %vm291 = vweird.f32 %v285
    %vm292 = vmor %vm290, %vm291
    %v293 = vsel %vm292, %v285, %v289
    %v294 = vand.u32 2147483647, %v284
    %vm295 = vcmp.eq.f32.partialorder %v294, 8.507059e+37
    %v296 = vand.u32 %v284, 2147483648
    %v297 = vor.u32 1.1754944e-38, %v296
    %v298 = vsel %vm295, %v297, %v293
    %v299 = vmul.f32 1.0, %v298
    %v300 = vtanh.pop %v280
    %v301 = vxor.u32 %v280, 2147483648
    %v302 = vmul.f32 %v301, 1.442695
    %v303 = vpow.pop %v302
    %v304 = vadd.f32 %v303, 1.0
    %v305 = vrcp.pop %v304
    %v306 = vmul.f32 %v304, %v305
    %v307 = vsub.f32 1.0, %v306
    %v308 = vmul.f32 %v305, %v307
    %v309 = vadd.f32 %v305, %v308
    %vm310 = vweird.f32 %v304
    %vm311 = vweird.f32 %v305
    %vm312 = vmor %vm310, %vm311
    %v313 = vsel %vm312, %v305, %v309
    %v314 = vand.u32 2147483647, %v304
    %vm315 = vcmp.eq.f32.partialorder %v314, 8.507059e+37
    %v316 = vand.u32 %v304, 2147483648
    %v317 = vor.u32 1.1754944e-38, %v316
    %v318 = vsel %vm315, %v317, %v313
    %v319 = vmul.f32 1.0, %v318
    %v320 = vld [vmem:[#allocation3] sm:$0x3]
    %322 = vrot.lane.b32.xlu0 %v320, 64
    %v323 = vpop.permute.xlu0 %322
    %v325 = vmul.f32 %v299, %v323
    %v326 = vmul.f32 %v299, %v300
    %328 = vrot.lane.b32.xlu0 %v326, 64
    %v329 = vpop.permute.xlu0 %328
    %v331 = vadd.f32 %v325, %v329
    %v332 = vtanh.pop %v331
    %v333 = vmul.f32 %v319, %v332
    %335 = vrot.lane.b32.xlu0 %v331, 64
    %v336 = vpop.permute.xlu0 %335
    %338 = vst.msk [vmem:[#allocation3] sm:$0x3] %vm15, %v336
    %340 = vrot.lane.b32.xlu0 %v333, 64
    %v341 = vpop.permute.xlu0 %340
    %343 = vst.msk [vmem:[#allocation2] sm:$0x3] %vm15, %v341
    %s344 = scalar_lea.vmem %s2, %s261
    %345 = vst.msk [vmem:[%s344] sm:$0x3] %vm204, %v341
    %346 = vrot.lane.b32.xlu0 %v333, 32
    %v347 = vpop.permute.xlu0 %346
    %s349 = scalar_lea.vmem %s3, %s257
    %350 = vst.msk [vmem:[%s349] sm:$0x3] %vm204, %v347
    %s351 = sadd.s32 %s69, 2
    %v352 = vld [vmem:[#allocation2] sm:$0x3]
    %v354 = vsel %vm71, %v352, 0
    %356 = vmatpush.msra.mxu0 0.0
    %357 = vmatpush.msra.mxu0 0.0
    %358 = vmatpush.msra.mxu0 0.0
    %359 = vmatpush.msra.mxu0 0.0
    %360 = vmatpush.msra.mxu0 0.0
    %361 = vmatpush.msra.mxu0 0.0
    %362 = vmatpush.msra.mxu0 0.0
    %363 = vmatpush.msra.mxu0 0.0
    %364 = vmatpush.msra.mxu0 %v32
    %365 = vmatpush.msra.mxu0 %v30
    %366 = vmatpush.msra.mxu0 %v28
    %367 = vmatpush.msra.mxu0 %v26
    %368 = vmatpush.msra.mxu0 %v24
    %369 = vmatpush.msra.mxu0 %v22
    %370 = vmatpush.msra.mxu0 %v20
    %371 = vmatpush.msra.mxu0 %v18
    %372 = vmatmul.f32.gmra.mxu0 %v354
    %v373 = vpop.f32.mrf.mxu0
    %v374 = vadd.f32 0.0, %v373
    %375 = vdwg.mxu0
    %376 = vmatpush.msra.mxu0 0.0
    %377 = vmatpush.msra.mxu0 0.0
    %378 = vmatpush.msra.mxu0 0.0
    %379 = vmatpush.msra.mxu0 0.0
    %380 = vmatpush.msra.mxu0 0.0
    %381 = vmatpush.msra.mxu0 0.0
    %382 = vmatpush.msra.mxu0 0.0
    %383 = vmatpush.msra.mxu0 0.0
    %384 = vmatpush.msra.mxu0 %v33
    %385 = vmatpush.msra.mxu0 %v31
    %386 = vmatpush.msra.mxu0 %v29
    %387 = vmatpush.msra.mxu0 %v27
    %388 = vmatpush.msra.mxu0 %v25
    %389 = vmatpush.msra.mxu0 %v23
    %390 = vmatpush.msra.mxu0 %v21
    %391 = vmatpush.msra.mxu0 %v19
    %392 = vmatmul.f32.gmra.mxu0 %v354
    %v393 = vpop.f32.mrf.mxu0
    %v394 = vadd.f32 0.0, %v393
    %395 = vdwg.mxu0
    %s396 = ssub.s32 5, %s69
    %s397 = smul.u32 %s396, 2
    %s398 = smul.addr %s397, 2
    %s399 = scalar_lea.vmem %s0, %s398
    %v400 = vld [vmem:[%s399] sm:$0xf]
    %s401 = smul.u32 %s351, 2
    %s402 = smul.addr %s401, 2
    %s403 = scalar_lea.vmem %s0, %s402
    %v404 = vld [vmem:[%s403] sm:$0xf]
    %406 = vst [vmem:[#allocation1] ss:$4 sm:$0xff] %v400
    %v407 = vld.sshfl [vmem:[#allocation1] sm:$0xff pattern:$0x73625140]
    %v408 = vld.sshfl [vmem:[#allocation1 + $0x8] sm:$0xff pattern:$0x73625140]
    %412 = vst [vmem:[#allocation1] ss:$4 sm:$0xff] %v404
    %v413 = vld.sshfl [vmem:[#allocation1] sm:$0xff pattern:$0x73625140]
    %v414 = vld.sshfl [vmem:[#allocation1 + $0x8] sm:$0xff pattern:$0x73625140]
    %v417 = vsel %vm61, %v407, %v413
    %v418 = vsel %vm62, %v408, %v414
    %v419 = vadd.f32 %v417, %v374
    %v420 = vadd.f32 %v418, %v394
    %v421 = vxor.u32 %v419, 2147483648
    %v422 = vmul.f32 %v421, 1.442695
    %v423 = vpow.pop %v422
    %v424 = vadd.f32 %v423, 1.0
    %v425 = vrcp.pop %v424
    %v426 = vmul.f32 %v424, %v425
    %v427 = vsub.f32 1.0, %v426
    %v428 = vmul.f32 %v425, %v427
    %v429 = vadd.f32 %v425, %v428
    %vm430 = vweird.f32 %v424
    %vm431 = vweird.f32 %v425
    %vm432 = vmor %vm430, %vm431
    %v433 = vsel %vm432, %v425, %v429
    %v434 = vand.u32 2147483647, %v424
    %vm435 = vcmp.eq.f32.partialorder %v434, 8.507059e+37
    %v436 = vand.u32 %v424, 2147483648
    %v437 = vor.u32 1.1754944e-38, %v436
    %v438 = vsel %vm435, %v437, %v433
    %v439 = vmul.f32 1.0, %v438
    %v440 = vtanh.pop %v420
    %v441 = vxor.u32 %v420, 2147483648
    %v442 = vmul.f32 %v441, 1.442695
    %v443 = vpow.pop %v442
    %v444 = vadd.f32 %v443, 1.0
    %v445 = vrcp.pop %v444
    %v446 = vmul.f32 %v444, %v445
    %v447 = vsub.f32 1.0, %v446
    %v448 = vmul.f32 %v445, %v447
    %v449 = vadd.f32 %v445, %v448
    %vm450 = vweird.f32 %v444
    %vm451 = vweird.f32 %v445
    %vm452 = vmor %vm450, %vm451
    %v453 = vsel %vm452, %v445, %v449
    %v454 = vand.u32 2147483647, %v444
    %vm455 = vcmp.eq.f32.partialorder %v454, 8.507059e+37
    %v456 = vand.u32 %v444, 2147483648
    %v457 = vor.u32 1.1754944e-38, %v456
    %v458 = vsel %vm455, %v457, %v453
    %v459 = vmul.f32 1.0, %v458
    %v460 = vld [vmem:[#allocation3] sm:$0x3]
    %462 = vrot.lane.b32.xlu0 %v460, 64
    %v463 = vpop.permute.xlu0 %462
    %v465 = vmul.f32 %v439, %v463
    %v466 = vmul.f32 %v439, %v440
    %468 = vrot.lane.b32.xlu0 %v466, 64
    %v469 = vpop.permute.xlu0 %468
    %v471 = vadd.f32 %v465, %v469
    %v472 = vtanh.pop %v471
    %v473 = vmul.f32 %v459, %v472
    %475 = vrot.lane.b32.xlu0 %v471, 64
    %v476 = vpop.permute.xlu0 %475
    %478 = vst.msk [vmem:[#allocation3] sm:$0x3] %vm15, %v476
    %480 = vrot.lane.b32.xlu0 %v473, 64
    %v481 = vpop.permute.xlu0 %480
    %483 = vst.msk [vmem:[#allocation2] sm:$0x3] %vm15, %v481
    %s484 = scalar_lea.vmem %s2, %s401
    %485 = vst.msk [vmem:[%s484] sm:$0x3] %vm204, %v481
    %486 = vrot.lane.b32.xlu0 %v473, 32
    %v487 = vpop.permute.xlu0 %486
    %s489 = scalar_lea.vmem %s3, %s397
    %490 = vst.msk [vmem:[%s489] sm:$0x3] %vm204, %v487
    %s491 = sadd.s32 %s69, 3
    %v492 = vld [vmem:[#allocation2] sm:$0x3]
    %v494 = vsel %vm71, %v492, 0
    %496 = vmatpush.msra.mxu0 0.0
    %497 = vmatpush.msra.mxu0 0.0
    %498 = vmatpush.msra.mxu0 0.0
    %499 = vmatpush.msra.mxu0 0.0
    %500 = vmatpush.msra.mxu0 0.0
    %501 = vmatpush.msra.mxu0 0.0
    %502 = vmatpush.msra.mxu0 0.0
    %503 = vmatpush.msra.mxu0 0.0
    %504 = vmatpush.msra.mxu0 %v32
    %505 = vmatpush.msra.mxu0 %v30
    %506 = vmatpush.msra.mxu0 %v28
    %507 = vmatpush.msra.mxu0 %v26
    %508 = vmatpush.msra.mxu0 %v24
    %509 = vmatpush.msra.mxu0 %v22
    %510 = vmatpush.msra.mxu0 %v20
    %511 = vmatpush.msra.mxu0 %v18
    %512 = vmatmul.f32.gmra.mxu0 %v494
    %v513 = vpop.f32.mrf.mxu0
    %v514 = vadd.f32 0.0, %v513
    %515 = vdwg.mxu0
    %516 = vmatpush.msra.mxu0 0.0
    %517 = vmatpush.msra.mxu0 0.0
    %518 = vmatpush.msra.mxu0 0.0
    %519 = vmatpush.msra.mxu0 0.0
    %520 = vmatpush.msra.mxu0 0.0
    %521 = vmatpush.msra.mxu0 0.0
    %522 = vmatpush.msra.mxu0 0.0
    %523 = vmatpush.msra.mxu0 0.0
    %524 = vmatpush.msra.mxu0 %v33
    %525 = vmatpush.msra.mxu0 %v31
    %526 = vmatpush.msra.mxu0 %v29
    %527 = vmatpush.msra.mxu0 %v27
    %528 = vmatpush.msra.mxu0 %v25
    %529 = vmatpush.msra.mxu0 %v23
    %530 = vmatpush.msra.mxu0 %v21
    %531 = vmatpush.msra.mxu0 %v19
    %532 = vmatmul.f32.gmra.mxu0 %v494
    %v533 = vpop.f32.mrf.mxu0
    %v534 = vadd.f32 0.0, %v533
    %535 = vdwg.mxu0
    %s536 = ssub.s32 4, %s69
    %s537 = smul.u32 %s536, 2
    %s538 = smul.addr %s537, 2
    %s539 = scalar_lea.vmem %s0, %s538
    %v540 = vld [vmem:[%s539] sm:$0xf]
    %s541 = smul.u32 %s491, 2
    %s542 = smul.addr %s541, 2
    %s543 = scalar_lea.vmem %s0, %s542
    %v544 = vld [vmem:[%s543] sm:$0xf]
    %546 = vst [vmem:[#allocation1] ss:$4 sm:$0xff] %v540
    %v547 = vld.sshfl [vmem:[#allocation1] sm:$0xff pattern:$0x73625140]
    %v548 = vld.sshfl [vmem:[#allocation1 + $0x8] sm:$0xff pattern:$0x73625140]
    %552 = vst [vmem:[#allocation1] ss:$4 sm:$0xff] %v544
    %v553 = vld.sshfl [vmem:[#allocation1] sm:$0xff pattern:$0x73625140]
    %v554 = vld.sshfl [vmem:[#allocation1 + $0x8] sm:$0xff pattern:$0x73625140]
    %v557 = vsel %vm61, %v547, %v553
    %v558 = vsel %vm62, %v548, %v554
    %v559 = vadd.f32 %v557, %v514
    %v560 = vadd.f32 %v558, %v534
    %v561 = vxor.u32 %v559, 2147483648
    %v562 = vmul.f32 %v561, 1.442695
    %v563 = vpow.pop %v562
    %v564 = vadd.f32 %v563, 1.0
    %v565 = vrcp.pop %v564
    %v566 = vmul.f32 %v564, %v565
    %v567 = vsub.f32 1.0, %v566
    %v568 = vmul.f32 %v565, %v567
    %v569 = vadd.f32 %v565, %v568
    %vm570 = vweird.f32 %v564
    %vm571 = vweird.f32 %v565
    %vm572 = vmor %vm570, %vm571
    %v573 = vsel %vm572, %v565, %v569
    %v574 = vand.u32 2147483647, %v564
    %vm575 = vcmp.eq.f32.partialorder %v574, 8.507059e+37
    %v576 = vand.u32 %v564, 2147483648
    %v577 = vor.u32 1.1754944e-38, %v576
    %v578 = vsel %vm575, %v577, %v573
    %v579 = vmul.f32 1.0, %v578
    %v580 = vtanh.pop %v560
    %v581 = vxor.u32 %v560, 2147483648
    %v582 = vmul.f32 %v581, 1.442695
    %v583 = vpow.pop %v582
    %v584 = vadd.f32 %v583, 1.0
    %v585 = vrcp.pop %v584
    %v586 = vmul.f32 %v584, %v585
    %v587 = vsub.f32 1.0, %v586
    %v588 = vmul.f32 %v585, %v587
    %v589 = vadd.f32 %v585, %v588
    %vm590 = vweird.f32 %v584
    %vm591 = vweird.f32 %v585
    %vm592 = vmor %vm590, %vm591
    %v593 = vsel %vm592, %v585, %v589
    %v594 = vand.u32 2147483647, %v584
    %vm595 = vcmp.eq.f32.partialorder %v594, 8.507059e+37
    %v596 = vand.u32 %v584, 2147483648
    %v597 = vor.u32 1.1754944e-38, %v596
    %v598 = vsel %vm595, %v597, %v593
    %v599 = vmul.f32 1.0, %v598
    %v600 = vld [vmem:[#allocation3] sm:$0x3]
    %602 = vrot.lane.b32.xlu0 %v600, 64
    %v603 = vpop.permute.xlu0 %602
    %v605 = vmul.f32 %v579, %v603
    %v606 = vmul.f32 %v579, %v580
    %608 = vrot.lane.b32.xlu0 %v606, 64
    %v609 = vpop.permute.xlu0 %608
    %v611 = vadd.f32 %v605, %v609
    %v612 = vtanh.pop %v611
    %v613 = vmul.f32 %v599, %v612
    %615 = vrot.lane.b32.xlu0 %v611, 64
    %v616 = vpop.permute.xlu0 %615
    %618 = vst.msk [vmem:[#allocation3] sm:$0x3] %vm15, %v616
    %620 = vrot.lane.b32.xlu0 %v613, 64
    %v621 = vpop.permute.xlu0 %620
    %623 = vst.msk [vmem:[#allocation2] sm:$0x3] %vm15, %v621
    %s624 = scalar_lea.vmem %s2, %s541
    %625 = vst.msk [vmem:[%s624] sm:$0x3] %vm204, %v621
    %626 = vrot.lane.b32.xlu0 %v613, 32
    %v627 = vpop.permute.xlu0 %626
    %s629 = scalar_lea.vmem %s3, %s537
    %630 = vst.msk [vmem:[%s629] sm:$0x3] %vm204, %v627
  $region14: #{encoder_forward.5} parent=0 // loop_footer
    %s68 = sadd.s32 1, %s64
  $region15: #{encoder_forward.5} parent=0 // loop_footer_branch
    %63 = sbr.rel target = $region11
  $region16: #{encoder_forward.5} parent=0 // loop_exit
    _
  %v631 = vld [vmem:[#allocation2] sm:$0x3]
  %632 = vst.msk [vmem:[%s4] sm:$0x3] %vm15, %v631
  %v633 = vld [vmem:[#allocation3] sm:$0x3]
  %634 = vst.msk [vmem:[%s5] sm:$0x3] %vm15, %v633
  // Predicated region
  $region17: #{encoder_forward.5} parent=0 // pred_check
    _
  $region18: #{encoder_forward.5} parent=0 // pred_check_branch
    %636 = sbr.rel (0) target = $region20
  $region19: #{encoder_forward.5} parent=0 // pred_region
    _
  $region20: #{encoder_forward.5} parent=0 // pred_fallthru
    _
  // Predicated region
  $region21: #{encoder_forward.5} parent=0 // pred_check
    _
  $region22: #{encoder_forward.5} parent=0 // pred_check_branch
    %638 = sbr.rel (0) target = $region24
  $region23: #{encoder_forward.5} parent=0 // pred_region
    _
  $region24: #{encoder_forward.5} parent=0 // pred_fallthru
    _
  // Predicated region
  $region25: #{encoder_forward.5} parent=0 // pred_check
    _
  $region26: #{encoder_forward.5} parent=0 // pred_check_branch
    %640 = sbr.rel (0) target = $region28
  $region27: #{encoder_forward.5} parent=0 // pred_region
    _
  $region28: #{encoder_forward.5} parent=0 // pred_fallthru
    _
  // Predicated region
  $region29: #{encoder_forward.5} parent=0 // pred_check
    _
  $region30: #{encoder_forward.5} parent=0 // pred_check_branch
    %642 = sbr.rel (0) target = $region32
  $region31: #{encoder_forward.5} parent=0 // pred_region
    _
  $region32: #{encoder_forward.5} parent=0 // pred_fallthru
    _
  // Predicated region
  $region33: #{encoder_forward.5} parent=0 // pred_check
    _
  $region34: #{encoder_forward.5} parent=0 // pred_check_branch
    %644 = sbr.rel (0) target = $region36
  $region35: #{encoder_forward.5} parent=0 // pred_region
    _
  $region36: #{encoder_forward.5} parent=0 // pred_fallthru
    _
  // Predicated region
  $region37: #{encoder_forward.5} parent=0 // pred_check
    _
  $region38: #{encoder_forward.5} parent=0 // pred_check_branch
    %646 = sbr.rel (0) target = $region40
  $region39: #{encoder_forward.5} parent=0 // pred_region
    _
  $region40: #{encoder_forward.5} parent=0 // pred_fallthru
    _
  // Predicated region
  $region41: #{encoder_forward.5} parent=0 // pred_check
    _
  $region42: #{encoder_forward.5} parent=0 // pred_check_branch
    %648 = sbr.rel (0) target = $region44
  $region43: #{encoder_forward.5} parent=0 // pred_region
    _
  $region44: #{encoder_forward.5} parent=0 // pred_fallthru
    _
  // Predicated region
  $region45: #{encoder_forward.5} parent=0 // pred_check
    _
  $region46: #{encoder_forward.5} parent=0 // pred_check_branch
    %650 = sbr.rel (0) target = $region48
  $region47: #{encoder_forward.5} parent=0 // pred_region
    _
  $region48: #{encoder_forward.5} parent=0 // pred_fallthru
    _

// kernel: encoder_forward.7
$region0: #{encoder_forward.7}
  #allocation0 [shape = 'u32[]', space=smem, size = 0x4, offset = 0x4, fixed_abs, tag = 'smem constant byte address 0x4 - core index']
  #allocation1 [shape = 'u32[72,128]{1,0:T(1,128)}', space=vmem, size = 0x9000, scoped, tag = 'internal scratch']
  #allocation2 [shape = 'f32[2,64]{1,0:T(2,128)}', space=vmem, size = 0x400, scoped, tag = 'scratch operand']
  #allocation3 [shape = 'f32[2,64]{1,0:T(2,128)}', space=vmem, size = 0x400, scoped, tag = 'scratch operand']
  %s0 = inlined_call_operand.vmem [shape: f32[8,2,256], index: 0, kind: input, shape index: {}]
  %s1 = inlined_call_operand.vmem [shape: f32[64,256], index: 1, kind: input, shape index: {}]
  %s2 = inlined_call_operand.hbm [shape: f32[8,2,32], index: 2, kind: output, shape index: {0}]
  %s3 = inlined_call_operand.hbm [shape: f32[8,2,32], index: 3, kind: output, shape index: {1}]
  %s4 = inlined_call_operand.vmem [shape: f32[2,64], index: 4, kind: output, shape index: {2}]
  %s5 = inlined_call_operand.vmem [shape: f32[2,64], index: 5, kind: output, shape index: {3}]
  %6 = xla_tuple %s2, %s3, %s4, %s5
  %s7 = sld [smem:[#allocation0]]
  $region49: #{encoder_forward.7} parent=0
    _
  %s9 = ssub.s32 1, %s7
  %s10 = scalar_select 0, %s9, %s7
  $region1: #{encoder_forward.7} parent=0
    #allocation4 [shape = 'u8[8192]{0}', space=vmem, size = 0x2000, scoped, tag = 'output window, operand 0, single buffered']
    #allocation5 [shape = 's32[1]{0}', space=sflag, size = 0x4, scoped, tag = 'scoped memory for encoder_forward.7']
    #allocation6 [shape = 'u8[8192]{0}', space=vmem, size = 0x2000, scoped, tag = 'output window, operand 1, single buffered']
    #allocation7 [shape = 's32[1]{0}', space=sflag, size = 0x4, scoped, tag = 'scoped memory for encoder_forward.7']
    %11 = vsyncpa [#allocation5], 0
    %12 = vsyncpa [#allocation7], 0
    // Predicated region
    $region2: #{encoder_forward.7} parent=1 // pred_check
      _
    $region3: #{encoder_forward.7} parent=1 // pred_check_branch
      %14 = sbr.rel (0) target = $region5
    $region4: #{encoder_forward.7} parent=1 // pred_region
      _
    $region5: #{encoder_forward.7} parent=1 // pred_fallthru
      _
    // Predicated region
    $region6: #{encoder_forward.7} parent=1 // pred_check
      _
    $region7: #{encoder_forward.7} parent=1 // pred_check_branch
      %16 = sbr.rel (0) target = $region9
    $region8: #{encoder_forward.7} parent=1 // pred_region
      _
    $region9: #{encoder_forward.7} parent=1 // pred_fallthru
      _
    %vm17 = vcmask 517120
    %18 = vst.msk [vmem:[#allocation2] sm:$0x3] %vm17, 0.0
    %19 = vst.msk [vmem:[#allocation3] sm:$0x3] %vm17, 0.0
    %v20 = vld [vmem:[%s1] sm:$0xff]
    %v21 = vld [vmem:[%s1 + $0x8] sm:$0xff]
    %v22 = vld [vmem:[%s1 + $0x10] sm:$0xff]
    %v23 = vld [vmem:[%s1 + $0x18] sm:$0xff]
    %v24 = vld [vmem:[%s1 + $0x20] sm:$0xff]
    %v25 = vld [vmem:[%s1 + $0x28] sm:$0xff]
    %v26 = vld [vmem:[%s1 + $0x30] sm:$0xff]
    %v27 = vld [vmem:[%s1 + $0x38] sm:$0xff]
    %v28 = vld [vmem:[%s1 + $0x40] sm:$0xff]
    %v29 = vld [vmem:[%s1 + $0x48] sm:$0xff]
    %v30 = vld [vmem:[%s1 + $0x50] sm:$0xff]
    %v31 = vld [vmem:[%s1 + $0x58] sm:$0xff]
    %v32 = vld [vmem:[%s1 + $0x60] sm:$0xff]
    %v33 = vld [vmem:[%s1 + $0x68] sm:$0xff]
    %v34 = vld [vmem:[%s1 + $0x70] sm:$0xff]
    %v35 = vld [vmem:[%s1 + $0x78] sm:$0xff]
    %v36 = vlaneseq
    %v37 = vand.u32 %v36, 127
    %v38 = vadd.s32 %v37, 128
    %vm39 = vcmp.lt.s32.totalorder %v37, 0
    %v40 = vsub.s32 0, %v37
    %v41 = vsel %vm39, %v40, %v37
    %v42 = vshrl.u32 %v41, 6
    %v43 = vand.u32 %v41, 63
    %v44 = vsub.s32 0, %v43
    %v45 = vsel %vm39, %v44, %v43
    %vm46 = vcmp.lt.s32.totalorder %v38, 0
    %v47 = vsub.s32 0, %v38
    %v48 = vsel %vm46, %v47, %v38
    %v49 = vshrl.u32 %v48, 6
    %v50 = vand.u32 %v48, 63
    %v51 = vsub.s32 0, %v50
    %v52 = vsel %vm46, %v51, %v50
    %vm53 = vcmp.ne.s32.totalorder %v45, 0
    %vm54 = vcmp.ne.s32.totalorder %v52, 0
    %vm55 = vcmp.lt.s32.totalorder %v45, 0
    %vm56 = vcmp.lt.s32.totalorder %v52, 0
    %vm57 = vmand %vm55, %vm53
    %vm58 = vmand %vm56, %vm54
    %v59 = vadd.s32 %v45, 64
    %v60 = vadd.s32 %v52, 64
    %v61 = vsel %vm57, %v59, %v45
    %v62 = vsel %vm58, %v60, %v52
    %vm63 = vcmp.ge.s32.totalorder %v61, 32
    %vm64 = vcmp.ge.s32.totalorder %v62, 32
    loop: start=0, step=1, limit=2
    $region10: #{encoder_forward.7} parent=1 // loop_pre_header
      _
    $region11: #{encoder_forward.7} parent=1 // loop_header
      %s66 = sphi 0, %s70
      %p67 = scmp.ge.s32.totalorder %s66, 2
    $region12: #{encoder_forward.7} parent=1 // loop_header_branch
      %69 = sbr.rel (%p67) target = $region16
    $region13: #{encoder_forward.7} parent=1 // loop_body
      %s71 = smul.u32 %s66, 4
      %v72 = vld [vmem:[#allocation2] sm:$0x3]
      %vm73 = vcmask 523264
      %v75 = vsel %vm73, %v72, 0
      %77 = vmatpush.msra.mxu0 0.0
      %78 = vmatpush.msra.mxu0 0.0
      %79 = vmatpush.msra.mxu0 0.0
      %80 = vmatpush.msra.mxu0 0.0
      %81 = vmatpush.msra.mxu0 0.0
      %82 = vmatpush.msra.mxu0 0.0
      %83 = vmatpush.msra.mxu0 0.0
      %84 = vmatpush.msra.mxu0 0.0
      %85 = vmatpush.msra.mxu0 %v34
      %86 = vmatpush.msra.mxu0 %v32
      %87 = vmatpush.msra.mxu0 %v30
      %88 = vmatpush.msra.mxu0 %v28
      %89 = vmatpush.msra.mxu0 %v26
      %90 = vmatpush.msra.mxu0 %v24
      %91 = vmatpush.msra.mxu0 %v22
      %92 = vmatpush.msra.mxu0 %v20
      %93 = vmatmul.f32.gmra.mxu0 %v75
      %v94 = vpop.f32.mrf.mxu0
      %v95 = vadd.f32 0.0, %v94
      %96 = vdwg.mxu0
      %97 = vmatpush.msra.mxu0 0.0
      %98 = vmatpush.msra.mxu0 0.0
      %99 = vmatpush.msra.mxu0 0.0
      %100 = vmatpush.msra.mxu0 0.0
      %101 = vmatpush.msra.mxu0 0.0
      %102 = vmatpush.msra.mxu0 0.0
      %103 = vmatpush.msra.mxu0 0.0
      %104 = vmatpush.msra.mxu0 0.0
      %105 = vmatpush.msra.mxu0 %v35
      %106 = vmatpush.msra.mxu0 %v33
      %107 = vmatpush.msra.mxu0 %v31
      %108 = vmatpush.msra.mxu0 %v29
      %109 = vmatpush.msra.mxu0 %v27
      %110 = vmatpush.msra.mxu0 %v25
      %111 = vmatpush.msra.mxu0 %v23
      %112 = vmatpush.msra.mxu0 %v21
      %113 = vmatmul.f32.gmra.mxu0 %v75
      %v114 = vpop.f32.mrf.mxu0
      %v115 = vadd.f32 0.0, %v114
      %116 = vdwg.mxu0
      %s117 = ssub.s32 7, %s71
      %s118 = smul.u32 %s117, 2
      %s119 = smul.addr %s118, 2
      %s120 = scalar_lea.vmem %s0, %s119
      %v121 = vld [vmem:[%s120] sm:$0xf]
      %s122 = smul.u32 %s71, 2
      %s123 = smul.addr %s122, 2
      %s124 = scalar_lea.vmem %s0, %s123
      %v125 = vld [vmem:[%s124] sm:$0xf]
      %127 = vst [vmem:[#allocation1] ss:$4 sm:$0xff] %v121
      %v128 = vld.sshfl [vmem:[#allocation1] sm:$0xff pattern:$0x73625140]
      %v129 = vld.sshfl [vmem:[#allocation1 + $0x8] sm:$0xff pattern:$0x73625140]
      %133 = vst [vmem:[#allocation1] ss:$4 sm:$0xff] %v125
      %v134 = vld.sshfl [vmem:[#allocation1] sm:$0xff pattern:$0x73625140]
      %v135 = vld.sshfl [vmem:[#allocation1 + $0x8] sm:$0xff pattern:$0x73625140]
      %v138 = vsel %vm63, %v128, %v134
      %v139 = vsel %vm64, %v129, %v135
      %v140 = vadd.f32 %v138, %v95
      %v141 = vadd.f32 %v139, %v115
      %v142 = vxor.u32 %v140, 2147483648
      %v143 = vmul.f32 %v142, 1.442695
      %v144 = vpow.pop %v143
      %v145 = vadd.f32 %v144, 1.0
      %v146 = vrcp.pop %v145
      %v147 = vmul.f32 %v145, %v146
      %v148 = vsub.f32 1.0, %v147
      %v149 = vmul.f32 %v146, %v148
      %v150 = vadd.f32 %v146, %v149
      %vm151 = vweird.f32 %v145
      %vm152 = vweird.f32 %v146
      %vm153 = vmor %vm151, %vm152
      %v154 = vsel %vm153, %v146, %v150
      %v155 = vand.u32 2147483647, %v145
      %vm156 = vcmp.eq.f32.partialorder %v155, 8.507059e+37
      %v157 = vand.u32 %v145, 2147483648
      %v158 = vor.u32 1.1754944e-38, %v157
      %v159 = vsel %vm156, %v158, %v154
      %v160 = vmul.f32 1.0, %v159
      %v161 = vtanh.pop %v141
      %v162 = vxor.u32 %v141, 2147483648
      %v163 = vmul.f32 %v162, 1.442695
      %v164 = vpow.pop %v163
      %v165 = vadd.f32 %v164, 1.0
      %v166 = vrcp.pop %v165
      %v167 = vmul.f32 %v165, %v166
      %v168 = vsub.f32 1.0, %v167
      %v169 = vmul.f32 %v166, %v168
      %v170 = vadd.f32 %v166, %v169
      %vm171 = vweird.f32 %v165
      %vm172 = vweird.f32 %v166
      %vm173 = vmor %vm171, %vm172
      %v174 = vsel %vm173, %v166, %v170
      %v175 = vand.u32 2147483647, %v165
      %vm176 = vcmp.eq.f32.partialorder %v175, 8.507059e+37
      %v177 = vand.u32 %v165, 2147483648
      %v178 = vor.u32 1.1754944e-38, %v177
      %v179 = vsel %vm176, %v178, %v174
      %v180 = vmul.f32 1.0, %v179
      %v181 = vld [vmem:[#allocation3] sm:$0x3]
      %183 = vrot.lane.b32.xlu0 %v181, 64
      %v184 = vpop.permute.xlu0 %183
      %v186 = vmul.f32 %v160, %v184
      %v187 = vmul.f32 %v160, %v161
      %189 = vrot.lane.b32.xlu0 %v187, 64
      %v190 = vpop.permute.xlu0 %189
      %v192 = vadd.f32 %v186, %v190
      %v193 = vtanh.pop %v192
      %v194 = vmul.f32 %v180, %v193
      %196 = vrot.lane.b32.xlu0 %v192, 64
      %v197 = vpop.permute.xlu0 %196
      %199 = vst.msk [vmem:[#allocation3] sm:$0x3] %vm17, %v197
      %201 = vrot.lane.b32.xlu0 %v194, 64
      %v202 = vpop.permute.xlu0 %201
      %204 = vst.msk [vmem:[#allocation2] sm:$0x3] %vm17, %v202
      %s205 = scalar_lea.vmem [#allocation4], %s122
      %vm206 = vcmask 254976
      %207 = vst.msk [vmem:[%s205] sm:$0x3] %vm206, %v202
      %208 = vrot.lane.b32.xlu0 %v194, 32
      %v209 = vpop.permute.xlu0 %208
      %s211 = scalar_lea.vmem [#allocation6], %s118
      %212 = vst.msk [vmem:[%s211] sm:$0x3] %vm206, %v209
      %s213 = sadd.s32 %s71, 1
      %v214 = vld [vmem:[#allocation2] sm:$0x3]
      %v216 = vsel %vm73, %v214, 0
      %218 = vmatpush.msra.mxu0 0.0
      %219 = vmatpush.msra.mxu0 0.0
      %220 = vmatpush.msra.mxu0 0.0
      %221 = vmatpush.msra.mxu0 0.0
      %222 = vmatpush.msra.mxu0 0.0
      %223 = vmatpush.msra.mxu0 0.0
      %224 = vmatpush.msra.mxu0 0.0
      %225 = vmatpush.msra.mxu0 0.0
      %226 = vmatpush.msra.mxu0 %v34
      %227 = vmatpush.msra.mxu0 %v32
      %228 = vmatpush.msra.mxu0 %v30
      %229 = vmatpush.msra.mxu0 %v28
      %230 = vmatpush.msra.mxu0 %v26
      %231 = vmatpush.msra.mxu0 %v24
      %232 = vmatpush.msra.mxu0 %v22
      %233 = vmatpush.msra.mxu0 %v20
      %234 = vmatmul.f32.gmra.mxu0 %v216
      %v235 = vpop.f32.mrf.mxu0
      %v236 = vadd.f32 0.0, %v235
      %237 = vdwg.mxu0
      %238 = vmatpush.msra.mxu0 0.0
      %239 = vmatpush.msra.mxu0 0.0
      %240 = vmatpush.msra.mxu0 0.0
      %241 = vmatpush.msra.mxu0 0.0
      %242 = vmatpush.msra.mxu0 0.0
      %243 = vmatpush.msra.mxu0 0.0
      %244 = vmatpush.msra.mxu0 0.0
      %245 = vmatpush.msra.mxu0 0.0
      %246 = vmatpush.msra.mxu0 %v35
      %247 = vmatpush.msra.mxu0 %v33
      %248 = vmatpush.msra.mxu0 %v31
      %249 = vmatpush.msra.mxu0 %v29
      %250 = vmatpush.msra.mxu0 %v27
      %251 = vmatpush.msra.mxu0 %v25
      %252 = vmatpush.msra.mxu0 %v23
      %253 = vmatpush.msra.mxu0 %v21
      %254 = vmatmul.f32.gmra.mxu0 %v216
      %v255 = vpop.f32.mrf.mxu0
      %v256 = vadd.f32 0.0, %v255
      %257 = vdwg.mxu0
      %s258 = ssub.s32 6, %s71
      %s259 = smul.u32 %s258, 2
      %s260 = smul.addr %s259, 2
      %s261 = scalar_lea.vmem %s0, %s260
      %v262 = vld [vmem:[%s261] sm:$0xf]
      %s263 = smul.u32 %s213, 2
      %s264 = smul.addr %s263, 2
      %s265 = scalar_lea.vmem %s0, %s264
      %v266 = vld [vmem:[%s265] sm:$0xf]
      %268 = vst [vmem:[#allocation1] ss:$4 sm:$0xff] %v262
      %v269 = vld.sshfl [vmem:[#allocation1] sm:$0xff pattern:$0x73625140]
      %v270 = vld.sshfl [vmem:[#allocation1 + $0x8] sm:$0xff pattern:$0x73625140]
      %274 = vst [vmem:[#allocation1] ss:$4 sm:$0xff] %v266
      %v275 = vld.sshfl [vmem:[#allocation1] sm:$0xff pattern:$0x73625140]
      %v276 = vld.sshfl [vmem:[#allocation1 + $0x8] sm:$0xff pattern:$0x73625140]
      %v279 = vsel %vm63, %v269, %v275
      %v280 = vsel %vm64, %v270, %v276
      %v281 = vadd.f32 %v279, %v236
      %v282 = vadd.f32 %v280, %v256
      %v283 = vxor.u32 %v281, 2147483648
      %v284 = vmul.f32 %v283, 1.442695
      %v285 = vpow.pop %v284
      %v286 = vadd.f32 %v285, 1.0
      %v287 = vrcp.pop %v286
      %v288 = vmul.f32 %v286, %v287
      %v289 = vsub.f32 1.0, %v288
      %v290 = vmul.f32 %v287, %v289
      %v291 = vadd.f32 %v287, %v290
      %vm292 = vweird.f32 %v286
      %vm293 = vweird.f32 %v287
      %vm294 = vmor %vm292, %vm293
      %v295 = vsel %vm294, %v287, %v291
      %v296 = vand.u32 2147483647, %v286
      %vm297 = vcmp.eq.f32.partialorder %v296, 8.507059e+37
      %v298 = vand.u32 %v286, 2147483648
      %v299 = vor.u32 1.1754944e-38, %v298
      %v300 = vsel %vm297, %v299, %v295
      %v301 = vmul.f32 1.0, %v300
      %v302 = vtanh.pop %v282
      %v303 = vxor.u32 %v282, 2147483648
      %v304 = vmul.f32 %v303, 1.442695
      %v305 = vpow.pop %v304
      %v306 = vadd.f32 %v305, 1.0
      %v307 = vrcp.pop %v306
      %v308 = vmul.f32 %v306, %v307
      %v309 = vsub.f32 1.0, %v308
      %v310 = vmul.f32 %v307, %v309
      %v311 = vadd.f32 %v307, %v310
      %vm312 = vweird.f32 %v306
      %vm313 = vweird.f32 %v307
      %vm314 = vmor %vm312, %vm313
      %v315 = vsel %vm314, %v307, %v311
      %v316 = vand.u32 2147483647, %v306
      %vm317 = vcmp.eq.f32.partialorder %v316, 8.507059e+37
      %v318 = vand.u32 %v306, 2147483648
      %v319 = vor.u32 1.1754944e-38, %v318
      %v320 = vsel %vm317, %v319, %v315
      %v321 = vmul.f32 1.0, %v320
      %v322 = vld [vmem:[#allocation3] sm:$0x3]
      %324 = vrot.lane.b32.xlu0 %v322, 64
      %v325 = vpop.permute.xlu0 %324
      %v327 = vmul.f32 %v301, %v325
      %v328 = vmul.f32 %v301, %v302
      %330 = vrot.lane.b32.xlu0 %v328, 64
      %v331 = vpop.permute.xlu0 %330
      %v333 = vadd.f32 %v327, %v331
      %v334 = vtanh.pop %v333
      %v335 = vmul.f32 %v321, %v334
      %337 = vrot.lane.b32.xlu0 %v333, 64
      %v338 = vpop.permute.xlu0 %337
      %340 = vst.msk [vmem:[#allocation3] sm:$0x3] %vm17, %v338
      %342 = vrot.lane.b32.xlu0 %v335, 64
      %v343 = vpop.permute.xlu0 %342
      %345 = vst.msk [vmem:[#allocation2] sm:$0x3] %vm17, %v343
      %s346 = scalar_lea.vmem [#allocation4], %s263
      %347 = vst.msk [vmem:[%s346] sm:$0x3] %vm206, %v343
      %348 = vrot.lane.b32.xlu0 %v335, 32
      %v349 = vpop.permute.xlu0 %348
      %s351 = scalar_lea.vmem [#allocation6], %s259
      %352 = vst.msk [vmem:[%s351] sm:$0x3] %vm206, %v349
      %s353 = sadd.s32 %s71, 2
      %v354 = vld [vmem:[#allocation2] sm:$0x3]
      %v356 = vsel %vm73, %v354, 0
      %358 = vmatpush.msra.mxu0 0.0
      %359 = vmatpush.msra.mxu0 0.0
      %360 = vmatpush.msra.mxu0 0.0
      %361 = vmatpush.msra.mxu0 0.0
      %362 = vmatpush.msra.mxu0 0.0
      %363 = vmatpush.msra.mxu0 0.0
      %364 = vmatpush.msra.mxu0 0.0
      %365 = vmatpush.msra.mxu0 0.0
      %366 = vmatpush.msra.mxu0 %v34
      %367 = vmatpush.msra.mxu0 %v32
      %368 = vmatpush.msra.mxu0 %v30
      %369 = vmatpush.msra.mxu0 %v28
      %370 = vmatpush.msra.mxu0 %v26
      %371 = vmatpush.msra.mxu0 %v24
      %372 = vmatpush.msra.mxu0 %v22
      %373 = vmatpush.msra.mxu0 %v20
      %374 = vmatmul.f32.gmra.mxu0 %v356
      %v375 = vpop.f32.mrf.mxu0
      %v376 = vadd.f32 0.0, %v375
      %377 = vdwg.mxu0
      %378 = vmatpush.msra.mxu0 0.0
      %379 = vmatpush.msra.mxu0 0.0
      %380 = vmatpush.msra.mxu0 0.0
      %381 = vmatpush.msra.mxu0 0.0
      %382 = vmatpush.msra.mxu0 0.0
      %383 = vmatpush.msra.mxu0 0.0
      %384 = vmatpush.msra.mxu0 0.0
      %385 = vmatpush.msra.mxu0 0.0
      %386 = vmatpush.msra.mxu0 %v35
      %387 = vmatpush.msra.mxu0 %v33
      %388 = vmatpush.msra.mxu0 %v31
      %389 = vmatpush.msra.mxu0 %v29
      %390 = vmatpush.msra.mxu0 %v27
      %391 = vmatpush.msra.mxu0 %v25
      %392 = vmatpush.msra.mxu0 %v23
      %393 = vmatpush.msra.mxu0 %v21
      %394 = vmatmul.f32.gmra.mxu0 %v356
      %v395 = vpop.f32.mrf.mxu0
      %v396 = vadd.f32 0.0, %v395
      %397 = vdwg.mxu0
      %s398 = ssub.s32 5, %s71
      %s399 = smul.u32 %s398, 2
      %s400 = smul.addr %s399, 2
      %s401 = scalar_lea.vmem %s0, %s400
      %v402 = vld [vmem:[%s401] sm:$0xf]
      %s403 = smul.u32 %s353, 2
      %s404 = smul.addr %s403, 2
      %s405 = scalar_lea.vmem %s0, %s404
      %v406 = vld [vmem:[%s405] sm:$0xf]
      %408 = vst [vmem:[#allocation1] ss:$4 sm:$0xff] %v402
      %v409 = vld.sshfl [vmem:[#allocation1] sm:$0xff pattern:$0x73625140]
      %v410 = vld.sshfl [vmem:[#allocation1 + $0x8] sm:$0xff pattern:$0x73625140]
      %414 = vst [vmem:[#allocation1] ss:$4 sm:$0xff] %v406
      %v415 = vld.sshfl [vmem:[#allocation1] sm:$0xff pattern:$0x73625140]
      %v416 = vld.sshfl [vmem:[#allocation1 + $0x8] sm:$0xff pattern:$0x73625140]
      %v419 = vsel %vm63, %v409, %v415
      %v420 = vsel %vm64, %v410, %v416
      %v421 = vadd.f32 %v419, %v376
      %v422 = vadd.f32 %v420, %v396
      %v423 = vxor.u32 %v421, 2147483648
      %v424 = vmul.f32 %v423, 1.442695
      %v425 = vpow.pop %v424
      %v426 = vadd.f32 %v425, 1.0
      %v427 = vrcp.pop %v426
      %v428 = vmul.f32 %v426, %v427
      %v429 = vsub.f32 1.0, %v428
      %v430 = vmul.f32 %v427, %v429
      %v431 = vadd.f32 %v427, %v430
      %vm432 = vweird.f32 %v426
      %vm433 = vweird.f32 %v427
      %vm434 = vmor %vm432, %vm433
      %v435 = vsel %vm434, %v427, %v431
      %v436 = vand.u32 2147483647, %v426
      %vm437 = vcmp.eq.f32.partialorder %v436, 8.507059e+37
      %v438 = vand.u32 %v426, 2147483648
      %v439 = vor.u32 1.1754944e-38, %v438
      %v440 = vsel %vm437, %v439, %v435
      %v441 = vmul.f32 1.0, %v440
      %v442 = vtanh.pop %v422
      %v443 = vxor.u32 %v422, 2147483648
      %v444 = vmul.f32 %v443, 1.442695
      %v445 = vpow.pop %v444
      %v446 = vadd.f32 %v445, 1.0
      %v447 = vrcp.pop %v446
      %v448 = vmul.f32 %v446, %v447
      %v449 = vsub.f32 1.0, %v448
      %v450 = vmul.f32 %v447, %v449
      %v451 = vadd.f32 %v447, %v450
      %vm452 = vweird.f32 %v446
      %vm453 = vweird.f32 %v447
      %vm454 = vmor %vm452, %vm453
      %v455 = vsel %vm454, %v447, %v451
      %v456 = vand.u32 2147483647, %v446
      %vm457 = vcmp.eq.f32.partialorder %v456, 8.507059e+37
      %v458 = vand.u32 %v446, 2147483648
      %v459 = vor.u32 1.1754944e-38, %v458
      %v460 = vsel %vm457, %v459, %v455
      %v461 = vmul.f32 1.0, %v460
      %v462 = vld [vmem:[#allocation3] sm:$0x3]
      %464 = vrot.lane.b32.xlu0 %v462, 64
      %v465 = vpop.permute.xlu0 %464
      %v467 = vmul.f32 %v441, %v465
      %v468 = vmul.f32 %v441, %v442
      %470 = vrot.lane.b32.xlu0 %v468, 64
      %v471 = vpop.permute.xlu0 %470
      %v473 = vadd.f32 %v467, %v471
      %v474 = vtanh.pop %v473
      %v475 = vmul.f32 %v461, %v474
      %477 = vrot.lane.b32.xlu0 %v473, 64
      %v478 = vpop.permute.xlu0 %477
      %480 = vst.msk [vmem:[#allocation3] sm:$0x3] %vm17, %v478
      %482 = vrot.lane.b32.xlu0 %v475, 64
      %v483 = vpop.permute.xlu0 %482
      %485 = vst.msk [vmem:[#allocation2] sm:$0x3] %vm17, %v483
      %s486 = scalar_lea.vmem [#allocation4], %s403
      %487 = vst.msk [vmem:[%s486] sm:$0x3] %vm206, %v483
      %488 = vrot.lane.b32.xlu0 %v475, 32
      %v489 = vpop.permute.xlu0 %488
      %s491 = scalar_lea.vmem [#allocation6], %s399
      %492 = vst.msk [vmem:[%s491] sm:$0x3] %vm206, %v489
      %s493 = sadd.s32 %s71, 3
      %v494 = vld [vmem:[#allocation2] sm:$0x3]
      %v496 = vsel %vm73, %v494, 0
      %498 = vmatpush.msra.mxu0 0.0
      %499 = vmatpush.msra.mxu0 0.0
      %500 = vmatpush.msra.mxu0 0.0
      %501 = vmatpush.msra.mxu0 0.0
      %502 = vmatpush.msra.mxu0 0.0
      %503 = vmatpush.msra.mxu0 0.0
      %504 = vmatpush.msra.mxu0 0.0
      %505 = vmatpush.msra.mxu0 0.0
      %506 = vmatpush.msra.mxu0 %v34
      %507 = vmatpush.msra.mxu0 %v32
      %508 = vmatpush.msra.mxu0 %v30
      %509 = vmatpush.msra.mxu0 %v28
      %510 = vmatpush.msra.mxu0 %v26
      %511 = vmatpush.msra.mxu0 %v24
      %512 = vmatpush.msra.mxu0 %v22
      %513 = vmatpush.msra.mxu0 %v20
      %514 = vmatmul.f32.gmra.mxu0 %v496
      %v515 = vpop.f32.mrf.mxu0
      %v516 = vadd.f32 0.0, %v515
      %517 = vdwg.mxu0
      %518 = vmatpush.msra.mxu0 0.0
      %519 = vmatpush.msra.mxu0 0.0
      %520 = vmatpush.msra.mxu0 0.0
      %521 = vmatpush.msra.mxu0 0.0
      %522 = vmatpush.msra.mxu0 0.0
      %523 = vmatpush.msra.mxu0 0.0
      %524 = vmatpush.msra.mxu0 0.0
      %525 = vmatpush.msra.mxu0 0.0
      %526 = vmatpush.msra.mxu0 %v35
      %527 = vmatpush.msra.mxu0 %v33
      %528 = vmatpush.msra.mxu0 %v31
      %529 = vmatpush.msra.mxu0 %v29
      %530 = vmatpush.msra.mxu0 %v27
      %531 = vmatpush.msra.mxu0 %v25
      %532 = vmatpush.msra.mxu0 %v23
      %533 = vmatpush.msra.mxu0 %v21
      %534 = vmatmul.f32.gmra.mxu0 %v496
      %v535 = vpop.f32.mrf.mxu0
      %v536 = vadd.f32 0.0, %v535
      %537 = vdwg.mxu0
      %s538 = ssub.s32 4, %s71
      %s539 = smul.u32 %s538, 2
      %s540 = smul.addr %s539, 2
      %s541 = scalar_lea.vmem %s0, %s540
      %v542 = vld [vmem:[%s541] sm:$0xf]
      %s543 = smul.u32 %s493, 2
      %s544 = smul.addr %s543, 2
      %s545 = scalar_lea.vmem %s0, %s544
      %v546 = vld [vmem:[%s545] sm:$0xf]
      %548 = vst [vmem:[#allocation1] ss:$4 sm:$0xff] %v542
      %v549 = vld.sshfl [vmem:[#allocation1] sm:$0xff pattern:$0x73625140]
      %v550 = vld.sshfl [vmem:[#allocation1 + $0x8] sm:$0xff pattern:$0x73625140]
      %554 = vst [vmem:[#allocation1] ss:$4 sm:$0xff] %v546
      %v555 = vld.sshfl [vmem:[#allocation1] sm:$0xff pattern:$0x73625140]
      %v556 = vld.sshfl [vmem:[#allocation1 + $0x8] sm:$0xff pattern:$0x73625140]
      %v559 = vsel %vm63, %v549, %v555
      %v560 = vsel %vm64, %v550, %v556
      %v561 = vadd.f32 %v559, %v516
      %v562 = vadd.f32 %v560, %v536
      %v563 = vxor.u32 %v561, 2147483648
      %v564 = vmul.f32 %v563, 1.442695
      %v565 = vpow.pop %v564
      %v566 = vadd.f32 %v565, 1.0
      %v567 = vrcp.pop %v566
      %v568 = vmul.f32 %v566, %v567
      %v569 = vsub.f32 1.0, %v568
      %v570 = vmul.f32 %v567, %v569
      %v571 = vadd.f32 %v567, %v570
      %vm572 = vweird.f32 %v566
      %vm573 = vweird.f32 %v567
      %vm574 = vmor %vm572, %vm573
      %v575 = vsel %vm574, %v567, %v571
      %v576 = vand.u32 2147483647, %v566
      %vm577 = vcmp.eq.f32.partialorder %v576, 8.507059e+37
      %v578 = vand.u32 %v566, 2147483648
      %v579 = vor.u32 1.1754944e-38, %v578
      %v580 = vsel %vm577, %v579, %v575
      %v581 = vmul.f32 1.0, %v580
      %v582 = vtanh.pop %v562
      %v583 = vxor.u32 %v562, 2147483648
      %v584 = vmul.f32 %v583, 1.442695
      %v585 = vpow.pop %v584
      %v586 = vadd.f32 %v585, 1.0
      %v587 = vrcp.pop %v586
      %v588 = vmul.f32 %v586, %v587
      %v589 = vsub.f32 1.0, %v588
      %v590 = vmul.f32 %v587, %v589
      %v591 = vadd.f32 %v587, %v590
      %vm592 = vweird.f32 %v586
      %vm593 = vweird.f32 %v587
      %vm594 = vmor %vm592, %vm593
      %v595 = vsel %vm594, %v587, %v591
      %v596 = vand.u32 2147483647, %v586
      %vm597 = vcmp.eq.f32.partialorder %v596, 8.507059e+37
      %v598 = vand.u32 %v586, 2147483648
      %v599 = vor.u32 1.1754944e-38, %v598
      %v600 = vsel %vm597, %v599, %v595
      %v601 = vmul.f32 1.0, %v600
      %v602 = vld [vmem:[#allocation3] sm:$0x3]
      %604 = vrot.lane.b32.xlu0 %v602, 64
      %v605 = vpop.permute.xlu0 %604
      %v607 = vmul.f32 %v581, %v605
      %v608 = vmul.f32 %v581, %v582
      %610 = vrot.lane.b32.xlu0 %v608, 64
      %v611 = vpop.permute.xlu0 %610
      %v613 = vadd.f32 %v607, %v611
      %v614 = vtanh.pop %v613
      %v615 = vmul.f32 %v601, %v614
      %617 = vrot.lane.b32.xlu0 %v613, 64
      %v618 = vpop.permute.xlu0 %617
      %620 = vst.msk [vmem:[#allocation3] sm:$0x3] %vm17, %v618
      %622 = vrot.lane.b32.xlu0 %v615, 64
      %v623 = vpop.permute.xlu0 %622
      %625 = vst.msk [vmem:[#allocation2] sm:$0x3] %vm17, %v623
      %s626 = scalar_lea.vmem [#allocation4], %s543
      %627 = vst.msk [vmem:[%s626] sm:$0x3] %vm206, %v623
      %628 = vrot.lane.b32.xlu0 %v615, 32
      %v629 = vpop.permute.xlu0 %628
      %s631 = scalar_lea.vmem [#allocation6], %s539
      %632 = vst.msk [vmem:[%s631] sm:$0x3] %vm206, %v629
    $region14: #{encoder_forward.7} parent=1 // loop_footer
      %s70 = sadd.s32 1, %s66
    $region15: #{encoder_forward.7} parent=1 // loop_footer_branch
      %65 = sbr.rel target = $region11
    $region16: #{encoder_forward.7} parent=1 // loop_exit
      _
    %v633 = vld [vmem:[#allocation2] sm:$0x3]
    %634 = vst.msk [vmem:[%s4] sm:$0x3] %vm17, %v633
    %v635 = vld [vmem:[#allocation3] sm:$0x3]
    %636 = vst.msk [vmem:[%s5] sm:$0x3] %vm17, %v635
    // Predicated region
    $region17: #{encoder_forward.7} parent=1 // pred_check
      _
    $region18: #{encoder_forward.7} parent=1 // pred_check_branch
      %638 = sbr.rel (0) target = $region20
    $region19: #{encoder_forward.7} parent=1 // pred_region
      %640 = vsyncadd [#allocation5], 0
      %s641 = sshll.u32 [#allocation4], 4
      %s642 = int_to_ptr.vmem [resolvable:$true] %s641
      %s643 = sshll.u32 %s2, 4
      %s644 = int_to_ptr.hbm [resolvable:$true] %s643
      %649 = dma.vmem_to_hbm [thread:$0]  %s642, 256, %s644, [#allocation5], 32, 32, 2
    $region20: #{encoder_forward.7} parent=1 // pred_fallthru
      _
    // Predicated region
    $region21: #{encoder_forward.7} parent=1 // pred_check
      _
    $region22: #{encoder_forward.7} parent=1 // pred_check_branch
      %651 = sbr.rel (0) target = $region24
    $region23: #{encoder_forward.7} parent=1 // pred_region
      %653 = vsyncadd [#allocation7], 0
      %s654 = sshll.u32 [#allocation6], 4
      %s655 = int_to_ptr.vmem [resolvable:$true] %s654
      %s656 = sshll.u32 %s3, 4
      %s657 = int_to_ptr.hbm [resolvable:$true] %s656
      %662 = dma.vmem_to_hbm [thread:$0]  %s655, 256, %s657, [#allocation7], 32, 32, 2
    $region24: #{encoder_forward.7} parent=1 // pred_fallthru
      _
    // Predicated region
    $region25: #{encoder_forward.7} parent=1 // pred_check
      _
    $region26: #{encoder_forward.7} parent=1 // pred_check_branch
      %664 = sbr.rel (0) target = $region28
    $region27: #{encoder_forward.7} parent=1 // pred_region
      _
    $region28: #{encoder_forward.7} parent=1 // pred_fallthru
      _
    // Predicated region
    $region29: #{encoder_forward.7} parent=1 // pred_check
      _
    $region30: #{encoder_forward.7} parent=1 // pred_check_branch
      %666 = sbr.rel (0) target = $region32
    $region31: #{encoder_forward.7} parent=1 // pred_region
      _
    $region32: #{encoder_forward.7} parent=1 // pred_fallthru
      _
    // Predicated region
    $region33: #{encoder_forward.7} parent=1 // pred_check
      _
    $region34: #{encoder_forward.7} parent=1 // pred_check_branch
      %668 = sbr.rel (0) target = $region36
    $region35: #{encoder_forward.7} parent=1 // pred_region
      %670 = dma.done [#allocation5], 256
    $region36: #{encoder_forward.7} parent=1 // pred_fallthru
      _
    // Predicated region
    $region37: #{encoder_forward.7} parent=1 // pred_check
      _
    $region38: #{encoder_forward.7} parent=1 // pred_check_branch
      %672 = sbr.rel (0) target = $region40
    $region39: #{encoder_forward.7} parent=1 // pred_region
      %674 = dma.done [#allocation7], 256
    $region40: #{encoder_forward.7} parent=1 // pred_fallthru
      _
    // Predicated region
    $region41: #{encoder_forward.7} parent=1 // pred_check
      _
    $region42: #{encoder_forward.7} parent=1 // pred_check_branch
      %676 = sbr.rel (0) target = $region44
    $region43: #{encoder_forward.7} parent=1 // pred_region
      _
    $region44: #{encoder_forward.7} parent=1 // pred_fallthru
      _
    // Predicated region
    $region45: #{encoder_forward.7} parent=1 // pred_check
      _
    $region46: #{encoder_forward.7} parent=1 // pred_check_branch
      %678 = sbr.rel (0) target = $region48
    $region47: #{encoder_forward.7} parent=1 // pred_region
      _
    $region48: #{encoder_forward.7} parent=1 // pred_fallthru
      _
    %679 = vsyncpa [#allocation5], 1
    %680 = vsyncpa [#allocation7], 1

</llo_original>
